<compile_context>
chip_gen: v7x
topology: tpu7x:2x2x1
jax: 0.10.0
libtpu: 0.0.40
codegen_flags: <defaults>
</compile_context>

<pallas_src>
import jax
import jax.numpy as jnp
import numpy as np
from jax.experimental import pallas as pl
from jax.experimental.pallas import tpu as pltpu

EPS = 1e-5  # PyTorch InstanceNorm2d default (affine=False, biased variance)


# ---------------- in-kernel helpers (traced inside the Pallas body) ----------------

def _conv3x3_reflect(y, wf, b, H, W, C):
    """3x3 conv with ReflectionPad2d(1) fused into a kx-fold.

    y : (H, W, C)   f32   activation
    wf: (3, 3*C, C) bf16  folded weights, wf[ky][kx*C + ci, co] == w_oihw[co, ci, ky, kx]
    b : (1, C)      f32   bias
    returns (H, W, C) f32
    """
    yb = y.astype(jnp.bfloat16)  # MXU operands in bf16, cast once before folding
    # kx-fold with reflection on the W (sublane) axis:
    #   fold[r, w, kx*C + c] == reflect_pad1(y)[r, w + kx, c]
    left = jnp.concatenate([yb[:, 1:2], yb[:, :W - 1]], axis=1)        # kx = 0
    right = jnp.concatenate([yb[:, 1:], yb[:, W - 2:W - 1]], axis=1)   # kx = 2
    fold = jnp.concatenate([left, yb, right], axis=-1)                 # (H, W, 3C)
    # reflection on the H axis (leading dim -> tile-aligned slices)
    fold = jnp.concatenate([fold[1:2], fold, fold[H - 2:H - 1]], axis=0)  # (H+2, W, 3C)

    # bias broadcast once (hoisted out of the tap loop; constant per channel)
    acc = jnp.broadcast_to(b[0][None, None, :], (H, W, C)).astype(jnp.float32)
    for ky in range(3):  # unrolled at trace time; H-axis slices are tile aligned
        acc = acc + jax.lax.dot_general(
            fold[ky:ky + H], wf[ky],
            dimension_numbers=(((2,), (0,)), ((), ())),
            preferred_element_type=jnp.float32)
    return acc


def _instance_norm(y):
    # per-channel over the full spatial extent; `centered` computed once and reused
    mean = jnp.mean(y, axis=(0, 1), keepdims=True)
    centered = y - mean
    var = jnp.mean(centered * centered, axis=(0, 1), keepdims=True)
    return centered * jax.lax.rsqrt(var + EPS)


# --------------------------------- Pallas kernel -----------------------------------

def residual_block_kernel(x_ref, w1_ref, b1_ref, w2_ref, b2_ref, o_ref):
    x = x_ref[0]                          # (H, W, C) f32
    H, W, C = x.shape
    w1 = w1_ref[...]                      # (3, 3C, C) bf16 — read each weight once
    w2 = w2_ref[...]

    # conv1 -> instance norm -> relu
    y = _conv3x3_reflect(x, w1, b1_ref[...], H, W, C)
    y = jnp.maximum(_instance_norm(y), 0.0)

    # conv2 -> instance norm
    z = _instance_norm(_conv3x3_reflect(y, w2, b2_ref[...], H, W, C))

    # residual add
    o_ref[...] = (x + z)[None].astype(o_ref.dtype)


# ----------------------------------- wrapper ---------------------------------------

def _fold_weights(w_oihw):
    # OIHW (Cout, Cin, 3, 3) -> (ky, kx*Cin, Cout) bf16, matching the in-kernel kx fold
    Cout, Cin, _, _ = w_oihw.shape
    w = jnp.transpose(w_oihw, (2, 3, 1, 0))            # (ky, kx, Cin, Cout)
    return w.reshape(3, 3 * Cin, Cout).astype(jnp.bfloat16)


@jax.jit
def residual_block(x_nchw, w1_oihw, b1, w2_oihw, b2):
    N, C, H, W = x_nchw.shape
    x = jnp.transpose(x_nchw, (0, 2, 3, 1))            # NCHW -> NHWC (lane axis = C)
    w1 = _fold_weights(w1_oihw)
    w2 = _fold_weights(w2_oihw)
    b1r = b1.reshape(1, C).astype(jnp.float32)
    b2r = b2.reshape(1, C).astype(jnp.float32)

    # scoped VMEM sized to the real working set (x2 headroom), capped at 64 MiB (v7x)
    f32b = 4
    hwc = H * W * C * f32b
    io_bytes = 2 * 2 * hwc                              # x + out blocks, double-buffered
    w_bytes = 2 * 2 * (9 * C * C * 2 + C * f32b)        # bf16 weights + f32 biases
    live = 2 * (H + 2) * W * 3 * C * (f32b + 2) + 8 * hwc  # folds + y/z/acc intermediates
    vmem_limit = int(min(64 * 1024 * 1024,
                         max(32 * 1024 * 1024, 2 * (io_bytes + w_bytes + live))))

    out_nhwc = pl.pallas_call(
        residual_block_kernel,
        out_shape=jax.ShapeDtypeStruct((N, H, W, C), x.dtype),
        grid_spec=pltpu.PrefetchScalarGridSpec(
            num_scalar_prefetch=0,
            grid=(N,),
            in_specs=[
                pl.BlockSpec((1, H, W, C), lambda n: (n, 0, 0, 0)),
                pl.BlockSpec((3, 3 * C, C), lambda n: (0, 0, 0)),
                pl.BlockSpec((1, C), lambda n: (0, 0)),
                pl.BlockSpec((3, 3 * C, C), lambda n: (0, 0, 0)),
                pl.BlockSpec((1, C), lambda n: (0, 0)),
            ],
            out_specs=pl.BlockSpec((1, H, W, C), lambda n: (n, 0, 0, 0)),
        ),
        compiler_params=pltpu.CompilerParams(
            dimension_semantics=("parallel",),
            vmem_limit_bytes=vmem_limit,
        ),
        input_output_aliases={0: 0},                    # output reuses x's HBM buffer
    )(x, w1, b1r, w2, b2r)

    return jnp.transpose(out_nhwc, (0, 3, 1, 2))        # NHWC -> NCHW


# ------------------------------ pure-JAX reference ----------------------------------

def reference(x_nchw, w1, b1, w2, b2):
    def conv(x, w, b):
        xp = jnp.pad(x, ((0, 0), (0, 0), (1, 1), (1, 1)), mode="reflect")
        y = jax.lax.conv_general_dilated(
            xp, w, (1, 1), "VALID",
            dimension_numbers=("NCHW", "OIHW", "NCHW"),
            precision=jax.lax.Precision.HIGHEST)
        return y + b[None, :, None, None]

    def inorm(y):
        m = jnp.mean(y, axis=(2, 3), keepdims=True)
        v = jnp.mean((y - m) ** 2, axis=(2, 3), keepdims=True)
        return (y - m) * jax.lax.rsqrt(v + EPS)

    y = jnp.maximum(inorm(conv(x_nchw, w1, b1)), 0.0)
    z = inorm(conv(y, w2, b2))
    return x_nchw + z


if __name__ == "__main__":
    key = jax.random.PRNGKey(0)
    N, C, H, W = 2, 4, 16, 16
    k1, k2, k3, k4, k5 = jax.random.split(key, 5)

    x = jax.random.normal(k1, (N, C, H, W), jnp.float32)

    # deterministic Conv2d-style init (uniform in [-1/sqrt(fan_in), 1/sqrt(fan_in)])
    bound = 1.0 / np.sqrt(C * 3 * 3)
    w1 = jax.random.uniform(k2, (C, C, 3, 3), jnp.float32, -bound, bound)  # OIHW
    b1 = jax.random.uniform(k3, (C,), jnp.float32, -bound, bound)
    w2 = jax.random.uniform(k4, (C, C, 3, 3), jnp.float32, -bound, bound)
    b2 = jax.random.uniform(k5, (C,), jnp.float32, -bound, bound)

    out = jax.block_until_ready(residual_block(x, w1, b1, w2, b2))
    ref = jax.block_until_ready(reference(x, w1, b1, w2, b2))

    # Kernel matmuls are bf16-in / f32-accumulate (native MXU fast path); the reference
    # is f32 HIGHEST, so tolerance reflects bf16 operand rounding (~1e-2 level).
    np.testing.assert_allclose(np.asarray(out), np.asarray(ref), atol=5e-2, rtol=5e-2)
    print("KERNEL_OK")
</pallas_src>

<mosaic_0001>
module attributes {stable_mosaic.version = 11 : i64} {
  func.func @residual_block_kernel(%arg0: i32, %arg1: memref<1x16x16x4xf32, #tpu.memory_space<vmem>>, %arg2: memref<3x12x4xbf16, #tpu.memory_space<vmem>>, %arg3: memref<1x4xf32, #tpu.memory_space<vmem>>, %arg4: memref<3x12x4xbf16, #tpu.memory_space<vmem>>, %arg5: memref<1x4xf32, #tpu.memory_space<vmem>>, %arg6: memref<1x16x16x4xf32, #tpu.memory_space<vmem>>) attributes {dimension_semantics = [#tpu.dimension_semantics<parallel>], iteration_bounds = array<i64: 2>, scalar_prefetch = 0 : i64, scratch_operands = 0 : i64, tpu.core_type = #tpu.core_type<tc>, window_params = [{transform_indices = @transform_0, window_bounds = array<i64: 1, 16, 16, 4>}, {pipeline_mode = #tpu.pipeline_mode<synchronous>, transform_indices = @transform_1, window_bounds = array<i64: 3, 12, 4>}, {pipeline_mode = #tpu.pipeline_mode<synchronous>, transform_indices = @transform_2, window_bounds = array<i64: 1, 4>}, {pipeline_mode = #tpu.pipeline_mode<synchronous>, transform_indices = @transform_3, window_bounds = array<i64: 3, 12, 4>}, {pipeline_mode = #tpu.pipeline_mode<synchronous>, transform_indices = @transform_4, window_bounds = array<i64: 1, 4>}, {transform_indices = @transform_5, window_bounds = array<i64: 1, 16, 16, 4>}]} {
    %c0 = arith.constant 0 : index
    %c0_0 = arith.constant 0 : index
    %c0_1 = arith.constant 0 : index
    %c0_2 = arith.constant 0 : index
    %0 = vector.load %arg1[%c0, %c0_0, %c0_1, %c0_2] : memref<1x16x16x4xf32, #tpu.memory_space<vmem>>, vector<1x16x16x4xf32>
    %1 = vector.shape_cast %0 : vector<1x16x16x4xf32> to vector<16x16x4xf32>
    %c0_3 = arith.constant 0 : index
    %c0_4 = arith.constant 0 : index
    %c0_5 = arith.constant 0 : index
    %2 = vector.load %arg2[%c0_3, %c0_4, %c0_5] : memref<3x12x4xbf16, #tpu.memory_space<vmem>>, vector<3x12x4xbf16>
    %c0_6 = arith.constant 0 : index
    %c0_7 = arith.constant 0 : index
    %c0_8 = arith.constant 0 : index
    %3 = vector.load %arg4[%c0_6, %c0_7, %c0_8] : memref<3x12x4xbf16, #tpu.memory_space<vmem>>, vector<3x12x4xbf16>
    %c0_9 = arith.constant 0 : index
    %c0_10 = arith.constant 0 : index
    %4 = vector.load %arg3[%c0_9, %c0_10] : memref<1x4xf32, #tpu.memory_space<vmem>>, vector<1x4xf32>
    %5 = arith.truncf %1 : vector<16x16x4xf32> to vector<16x16x4xbf16>
    %6 = vector.extract_strided_slice %5 {offsets = [0, 1, 0], sizes = [16, 1, 4], strides = [1, 1, 1]} : vector<16x16x4xbf16> to vector<16x1x4xbf16>
    %7 = vector.extract_strided_slice %5 {offsets = [0, 0, 0], sizes = [16, 15, 4], strides = [1, 1, 1]} : vector<16x16x4xbf16> to vector<16x15x4xbf16>
    %8 = tpu.concatenate %6, %7 in 1 : vector<16x1x4xbf16>, vector<16x15x4xbf16> -> vector<16x16x4xbf16>
    %9 = vector.extract_strided_slice %5 {offsets = [0, 1, 0], sizes = [16, 15, 4], strides = [1, 1, 1]} : vector<16x16x4xbf16> to vector<16x15x4xbf16>
    %10 = vector.extract_strided_slice %5 {offsets = [0, 14, 0], sizes = [16, 1, 4], strides = [1, 1, 1]} : vector<16x16x4xbf16> to vector<16x1x4xbf16>
    %11 = tpu.concatenate %9, %10 in 1 : vector<16x15x4xbf16>, vector<16x1x4xbf16> -> vector<16x16x4xbf16>
    %12 = tpu.concatenate %8, %5, %11 in 2 : vector<16x16x4xbf16>, vector<16x16x4xbf16>, vector<16x16x4xbf16> -> vector<16x16x12xbf16>
    %13 = vector.extract_strided_slice %12 {offsets = [1, 0, 0], sizes = [1, 16, 12], strides = [1, 1, 1]} : vector<16x16x12xbf16> to vector<1x16x12xbf16>
    %14 = vector.extract_strided_slice %12 {offsets = [14, 0, 0], sizes = [1, 16, 12], strides = [1, 1, 1]} : vector<16x16x12xbf16> to vector<1x16x12xbf16>
    %15 = tpu.concatenate %13, %12, %14 in 0 : vector<1x16x12xbf16>, vector<16x16x12xbf16>, vector<1x16x12xbf16> -> vector<18x16x12xbf16>
    %16 = vector.shape_cast %4 : vector<1x4xf32> to vector<4xf32>
    %17 = vector.shape_cast %16 : vector<4xf32> to vector<1x1x4xf32>
    %18 = vector.shape_cast %17 : vector<1x1x4xf32> to vector<1x1x4xf32>
    %19 = vector.broadcast %18 : vector<1x1x4xf32> to vector<16x16x4xf32>
    %20 = vector.extract_strided_slice %15 {offsets = [0, 0, 0], sizes = [16, 16, 12], strides = [1, 1, 1]} : vector<18x16x12xbf16> to vector<16x16x12xbf16>
    %21 = vector.extract_strided_slice %2 {offsets = [0, 0, 0], sizes = [1, 12, 4], strides = [1, 1, 1]} : vector<3x12x4xbf16> to vector<1x12x4xbf16>
    %22 = vector.shape_cast %21 : vector<1x12x4xbf16> to vector<12x4xbf16>
    %cst = arith.constant dense<0.000000e+00> : vector<16x16x4xf32>
    %23 = tpu.matmul %20, %22, %cst {dimension_numbers = #tpu.dot_dimension_numbers<[2], [0], [0, 1], [1], [0, 0, 0, 1, 1, 1], [], []>} : vector<16x16x12xbf16>, vector<12x4xbf16>, vector<16x16x4xf32> -> vector<16x16x4xf32>
    %24 = arith.addf %19, %23 : vector<16x16x4xf32>
    %25 = vector.extract_strided_slice %15 {offsets = [1, 0, 0], sizes = [16, 16, 12], strides = [1, 1, 1]} : vector<18x16x12xbf16> to vector<16x16x12xbf16>
    %26 = vector.extract_strided_slice %2 {offsets = [1, 0, 0], sizes = [1, 12, 4], strides = [1, 1, 1]} : vector<3x12x4xbf16> to vector<1x12x4xbf16>
    %27 = vector.shape_cast %26 : vector<1x12x4xbf16> to vector<12x4xbf16>
    %cst_11 = arith.constant dense<0.000000e+00> : vector<16x16x4xf32>
    %28 = tpu.matmul %25, %27, %cst_11 {dimension_numbers = #tpu.dot_dimension_numbers<[2], [0], [0, 1], [1], [0, 0, 0, 1, 1, 1], [], []>} : vector<16x16x12xbf16>, vector<12x4xbf16>, vector<16x16x4xf32> -> vector<16x16x4xf32>
    %29 = arith.addf %24, %28 : vector<16x16x4xf32>
    %30 = vector.extract_strided_slice %15 {offsets = [2, 0, 0], sizes = [16, 16, 12], strides = [1, 1, 1]} : vector<18x16x12xbf16> to vector<16x16x12xbf16>
    %31 = vector.extract_strided_slice %2 {offsets = [2, 0, 0], sizes = [1, 12, 4], strides = [1, 1, 1]} : vector<3x12x4xbf16> to vector<1x12x4xbf16>
    %32 = vector.shape_cast %31 : vector<1x12x4xbf16> to vector<12x4xbf16>
    %cst_12 = arith.constant dense<0.000000e+00> : vector<16x16x4xf32>
    %33 = tpu.matmul %30, %32, %cst_12 {dimension_numbers = #tpu.dot_dimension_numbers<[2], [0], [0, 1], [1], [0, 0, 0, 1, 1, 1], [], []>} : vector<16x16x12xbf16>, vector<12x4xbf16>, vector<16x16x4xf32> -> vector<16x16x4xf32>
    %34 = arith.addf %29, %33 : vector<16x16x4xf32>
    %cst_13 = arith.constant dense<0.000000e+00> : vector<4xf32>
    %35 = vector.multi_reduction <add>, %34, %cst_13 [0, 1] : vector<16x16x4xf32> to vector<4xf32>
    %36 = vector.shape_cast %35 : vector<4xf32> to vector<1x1x4xf32>
    %cst_14 = arith.constant 2.560000e+02 : f32
    %37 = vector.broadcast %cst_14 : f32 to vector<1x1x4xf32>
    %38 = arith.divf %36, %37 : vector<1x1x4xf32>
    %39 = vector.broadcast %38 : vector<1x1x4xf32> to vector<16x16x4xf32>
    %40 = arith.subf %34, %39 : vector<16x16x4xf32>
    %41 = arith.mulf %40, %40 : vector<16x16x4xf32>
    %cst_15 = arith.constant dense<0.000000e+00> : vector<4xf32>
    %42 = vector.multi_reduction <add>, %41, %cst_15 [0, 1] : vector<16x16x4xf32> to vector<4xf32>
    %43 = vector.shape_cast %42 : vector<4xf32> to vector<1x1x4xf32>
    %cst_16 = arith.constant 2.560000e+02 : f32
    %44 = vector.broadcast %cst_16 : f32 to vector<1x1x4xf32>
    %45 = arith.divf %43, %44 : vector<1x1x4xf32>
    %cst_17 = arith.constant 9.99999974E-6 : f32
    %46 = vector.broadcast %cst_17 : f32 to vector<1x1x4xf32>
    %47 = arith.addf %45, %46 : vector<1x1x4xf32>
    %48 = math.rsqrt %47 : vector<1x1x4xf32>
    %49 = vector.broadcast %48 : vector<1x1x4xf32> to vector<16x16x4xf32>
    %50 = arith.mulf %40, %49 : vector<16x16x4xf32>
    %cst_18 = arith.constant 0.000000e+00 : f32
    %51 = vector.broadcast %cst_18 : f32 to vector<16x16x4xf32>
    %52 = arith.maximumf %50, %51 : vector<16x16x4xf32>
    %c0_19 = arith.constant 0 : index
    %c0_20 = arith.constant 0 : index
    %53 = vector.load %arg5[%c0_19, %c0_20] : memref<1x4xf32, #tpu.memory_space<vmem>>, vector<1x4xf32>
    %54 = arith.truncf %52 : vector<16x16x4xf32> to vector<16x16x4xbf16>
    %55 = vector.extract_strided_slice %54 {offsets = [0, 1, 0], sizes = [16, 1, 4], strides = [1, 1, 1]} : vector<16x16x4xbf16> to vector<16x1x4xbf16>
    %56 = vector.extract_strided_slice %54 {offsets = [0, 0, 0], sizes = [16, 15, 4], strides = [1, 1, 1]} : vector<16x16x4xbf16> to vector<16x15x4xbf16>
    %57 = tpu.concatenate %55, %56 in 1 : vector<16x1x4xbf16>, vector<16x15x4xbf16> -> vector<16x16x4xbf16>
    %58 = vector.extract_strided_slice %54 {offsets = [0, 1, 0], sizes = [16, 15, 4], strides = [1, 1, 1]} : vector<16x16x4xbf16> to vector<16x15x4xbf16>
    %59 = vector.extract_strided_slice %54 {offsets = [0, 14, 0], sizes = [16, 1, 4], strides = [1, 1, 1]} : vector<16x16x4xbf16> to vector<16x1x4xbf16>
    %60 = tpu.concatenate %58, %59 in 1 : vector<16x15x4xbf16>, vector<16x1x4xbf16> -> vector<16x16x4xbf16>
    %61 = tpu.concatenate %57, %54, %60 in 2 : vector<16x16x4xbf16>, vector<16x16x4xbf16>, vector<16x16x4xbf16> -> vector<16x16x12xbf16>
    %62 = vector.extract_strided_slice %61 {offsets = [1, 0, 0], sizes = [1, 16, 12], strides = [1, 1, 1]} : vector<16x16x12xbf16> to vector<1x16x12xbf16>
    %63 = vector.extract_strided_slice %61 {offsets = [14, 0, 0], sizes = [1, 16, 12], strides = [1, 1, 1]} : vector<16x16x12xbf16> to vector<1x16x12xbf16>
    %64 = tpu.concatenate %62, %61, %63 in 0 : vector<1x16x12xbf16>, vector<16x16x12xbf16>, vector<1x16x12xbf16> -> vector<18x16x12xbf16>
    %65 = vector.shape_cast %53 : vector<1x4xf32> to vector<4xf32>
    %66 = vector.shape_cast %65 : vector<4xf32> to vector<1x1x4xf32>
    %67 = vector.shape_cast %66 : vector<1x1x4xf32> to vector<1x1x4xf32>
    %68 = vector.broadcast %67 : vector<1x1x4xf32> to vector<16x16x4xf32>
    %69 = vector.extract_strided_slice %64 {offsets = [0, 0, 0], sizes = [16, 16, 12], strides = [1, 1, 1]} : vector<18x16x12xbf16> to vector<16x16x12xbf16>
    %70 = vector.extract_strided_slice %3 {offsets = [0, 0, 0], sizes = [1, 12, 4], strides = [1, 1, 1]} : vector<3x12x4xbf16> to vector<1x12x4xbf16>
    %71 = vector.shape_cast %70 : vector<1x12x4xbf16> to vector<12x4xbf16>
    %cst_21 = arith.constant dense<0.000000e+00> : vector<16x16x4xf32>
    %72 = tpu.matmul %69, %71, %cst_21 {dimension_numbers = #tpu.dot_dimension_numbers<[2], [0], [0, 1], [1], [0, 0, 0, 1, 1, 1], [], []>} : vector<16x16x12xbf16>, vector<12x4xbf16>, vector<16x16x4xf32> -> vector<16x16x4xf32>
    %73 = arith.addf %68, %72 : vector<16x16x4xf32>
    %74 = vector.extract_strided_slice %64 {offsets = [1, 0, 0], sizes = [16, 16, 12], strides = [1, 1, 1]} : vector<18x16x12xbf16> to vector<16x16x12xbf16>
    %75 = vector.extract_strided_slice %3 {offsets = [1, 0, 0], sizes = [1, 12, 4], strides = [1, 1, 1]} : vector<3x12x4xbf16> to vector<1x12x4xbf16>
    %76 = vector.shape_cast %75 : vector<1x12x4xbf16> to vector<12x4xbf16>
    %cst_22 = arith.constant dense<0.000000e+00> : vector<16x16x4xf32>
    %77 = tpu.matmul %74, %76, %cst_22 {dimension_numbers = #tpu.dot_dimension_numbers<[2], [0], [0, 1], [1], [0, 0, 0, 1, 1, 1], [], []>} : vector<16x16x12xbf16>, vector<12x4xbf16>, vector<16x16x4xf32> -> vector<16x16x4xf32>
    %78 = arith.addf %73, %77 : vector<16x16x4xf32>
    %79 = vector.extract_strided_slice %64 {offsets = [2, 0, 0], sizes = [16, 16, 12], strides = [1, 1, 1]} : vector<18x16x12xbf16> to vector<16x16x12xbf16>
    %80 = vector.extract_strided_slice %3 {offsets = [2, 0, 0], sizes = [1, 12, 4], strides = [1, 1, 1]} : vector<3x12x4xbf16> to vector<1x12x4xbf16>
    %81 = vector.shape_cast %80 : vector<1x12x4xbf16> to vector<12x4xbf16>
    %cst_23 = arith.constant dense<0.000000e+00> : vector<16x16x4xf32>
    %82 = tpu.matmul %79, %81, %cst_23 {dimension_numbers = #tpu.dot_dimension_numbers<[2], [0], [0, 1], [1], [0, 0, 0, 1, 1, 1], [], []>} : vector<16x16x12xbf16>, vector<12x4xbf16>, vector<16x16x4xf32> -> vector<16x16x4xf32>
    %83 = arith.addf %78, %82 : vector<16x16x4xf32>
    %cst_24 = arith.constant dense<0.000000e+00> : vector<4xf32>
    %84 = vector.multi_reduction <add>, %83, %cst_24 [0, 1] : vector<16x16x4xf32> to vector<4xf32>
    %85 = vector.shape_cast %84 : vector<4xf32> to vector<1x1x4xf32>
    %cst_25 = arith.constant 2.560000e+02 : f32
    %86 = vector.broadcast %cst_25 : f32 to vector<1x1x4xf32>
    %87 = arith.divf %85, %86 : vector<1x1x4xf32>
    %88 = vector.broadcast %87 : vector<1x1x4xf32> to vector<16x16x4xf32>
    %89 = arith.subf %83, %88 : vector<16x16x4xf32>
    %90 = arith.mulf %89, %89 : vector<16x16x4xf32>
    %cst_26 = arith.constant dense<0.000000e+00> : vector<4xf32>
    %91 = vector.multi_reduction <add>, %90, %cst_26 [0, 1] : vector<16x16x4xf32> to vector<4xf32>
    %92 = vector.shape_cast %91 : vector<4xf32> to vector<1x1x4xf32>
    %cst_27 = arith.constant 2.560000e+02 : f32
    %93 = vector.broadcast %cst_27 : f32 to vector<1x1x4xf32>
    %94 = arith.divf %92, %93 : vector<1x1x4xf32>
    %cst_28 = arith.constant 9.99999974E-6 : f32
    %95 = vector.broadcast %cst_28 : f32 to vector<1x1x4xf32>
    %96 = arith.addf %94, %95 : vector<1x1x4xf32>
    %97 = math.rsqrt %96 : vector<1x1x4xf32>
    %98 = vector.broadcast %97 : vector<1x1x4xf32> to vector<16x16x4xf32>
    %99 = arith.mulf %89, %98 : vector<16x16x4xf32>
    %100 = arith.addf %1, %99 : vector<16x16x4xf32>
    %101 = vector.shape_cast %100 : vector<16x16x4xf32> to vector<1x16x16x4xf32>
    %c0_29 = arith.constant 0 : index
    %c0_30 = arith.constant 0 : index
    %c0_31 = arith.constant 0 : index
    %c0_32 = arith.constant 0 : index
    %102 = vector.load %arg6[%c0_29, %c0_30, %c0_31, %c0_32] : memref<1x16x16x4xf32, #tpu.memory_space<vmem>>, vector<1x16x16x4xf32>
    tpu.vector_store %arg6[%c0_29, %c0_30, %c0_31, %c0_32], %101 {strides = array<i32>} : memref<1x16x16x4xf32, #tpu.memory_space<vmem>>, vector<1x16x16x4xf32>,
    return
  }
  func.func @transform_0(%arg0: i32) -> (i32, i32, i32, i32) {
    %c0_i32 = arith.constant 0 : i32
    %c0_i32_0 = arith.constant 0 : i32
    %c0_i32_1 = arith.constant 0 : i32
    %c0_i32_2 = arith.constant 0 : i32
    return %arg0, %c0_i32, %c0_i32_0, %c0_i32_1 : i32, i32, i32, i32
  }
  func.func @transform_1(%arg0: i32) -> (i32, i32, i32) {
    %c0_i32 = arith.constant 0 : i32
    %c0_i32_0 = arith.constant 0 : i32
    %c0_i32_1 = arith.constant 0 : i32
    %c0_i32_2 = arith.constant 0 : i32
    return %c0_i32, %c0_i32_0, %c0_i32_1 : i32, i32, i32
  }
  func.func @transform_2(%arg0: i32) -> (i32, i32) {
    %c0_i32 = arith.constant 0 : i32
    %c0_i32_0 = arith.constant 0 : i32
    %c0_i32_1 = arith.constant 0 : i32
    return %c0_i32, %c0_i32_0 : i32, i32
  }
  func.func @transform_3(%arg0: i32) -> (i32, i32, i32) {
    %c0_i32 = arith.constant 0 : i32
    %c0_i32_0 = arith.constant 0 : i32
    %c0_i32_1 = arith.constant 0 : i32
    %c0_i32_2 = arith.constant 0 : i32
    return %c0_i32, %c0_i32_0, %c0_i32_1 : i32, i32, i32
  }
  func.func @transform_4(%arg0: i32) -> (i32, i32) {
    %c0_i32 = arith.constant 0 : i32
    %c0_i32_0 = arith.constant 0 : i32
    %c0_i32_1 = arith.constant 0 : i32
    return %c0_i32, %c0_i32_0 : i32, i32
  }
  func.func @transform_5(%arg0: i32) -> (i32, i32, i32, i32) {
    %c0_i32 = arith.constant 0 : i32
    %c0_i32_0 = arith.constant 0 : i32
    %c0_i32_1 = arith.constant 0 : i32
    %c0_i32_2 = arith.constant 0 : i32
    return %arg0, %c0_i32, %c0_i32_0, %c0_i32_1 : i32, i32, i32, i32
  }
}

</mosaic_0001>

<llo_original>
// kernel: residual_block.1
$region0: #{residual_block.1}
  #allocation0 [shape = 'u32[]', space=smem, size = 0x4, offset = 0x4, fixed_abs, tag = 'smem constant byte address 0x4 - core index']
  #allocation1 [shape = 'u32[144,128]{1,0:T(1,128)}', space=vmem, size = 0x12000, scoped, tag = 'internal scratch']
  %s0 = inlined_call_operand.vmem [shape: f32[2,16,16,4], index: 0, kind: input, shape index: {}, may-alias: {0,5}]
  %s1 = inlined_call_operand.vmem [shape: bf16[3,12,4], index: 1, kind: input, shape index: {}]
  %s2 = inlined_call_operand.vmem [shape: f32[1,4], index: 2, kind: input, shape index: {}]
  %s3 = inlined_call_operand.vmem [shape: bf16[3,12,4], index: 3, kind: input, shape index: {}]
  %s4 = inlined_call_operand.vmem [shape: f32[1,4], index: 4, kind: input, shape index: {}]
  %s5 = inlined_call_operand.vmem [shape: f32[2,16,16,4], index: 5, kind: output, shape index: {}, may-alias: {0,5}]
  %s6 = sld [smem:[#allocation0]]
  $region53: #{residual_block.1} parent=0
    _
  %s8 = ssub.s32 1, %s6
  %s9 = scalar_select 0, %s8, %s6
  loop: start=0, step=1, limit=4
  $region2: #{residual_block.1} parent=0 // loop_pre_header
    _
  $region3: #{residual_block.1} parent=0 // loop_header
    %s11 = sphi 0, %s15
    %p12 = scmp.ge.s32.totalorder %s11, 4
    %s21 = sphi 0, %s23
    %s24 = sphi 0, %s21
    %s25 = sphi 0, %s24
    %s41 = sphi 0, %s25
    %s45 = sphi 0, %s45
    %s47 = sphi 0, %s45
    %s48 = sphi 0, %s47
    %s62 = sphi 0, %s48
    %s66 = sphi 0, %s66
    %s68 = sphi 0, %s66
    %s69 = sphi 0, %s68
    %s83 = sphi 0, %s69
    %s87 = sphi 0, %s87
    %s89 = sphi 0, %s87
    %s90 = sphi 0, %s89
    %s104 = sphi 0, %s90
    %s108 = sphi 0, %s108
    %s110 = sphi 0, %s108
    %s111 = sphi 0, %s110
    %s125 = sphi 0, %s111
    %s131 = sphi 0, %s133
    %s134 = sphi 0, %s131
    %s135 = sphi 0, %s134
    %s151 = sphi 0, %s135
  $region4: #{residual_block.1} parent=0 // loop_header_branch
    %14 = sbr.rel (%p12) target = $region8
  $region5: #{residual_block.1} parent=0 // loop_body
    %s16 = ssub.s32 %s11, 1
    %s17 = ssub.s32 %s11, 2
    %s18 = sadd.s32 %s11, 1
    %s19 = ssub.s32 %s11, %s18
    %p20 = scmp.eq.s32.totalorder %s19, 0
    %s22 = sadd.s32 %s21, 1
    %s23 = scalar_select %p20, %s21, %s22
    %p26 = pneg %p20
    %p27 = scmp.eq.s32.totalorder %s11, 1
    %p28 = por %p26, %p27
    %p29 = scmp.ne.s32.totalorder %s21, %s24
    %p30 = scmp.eq.s32.totalorder %s11, 0
    %p31 = por %p29, %p30
    %p32 = scmp.ne.s32.totalorder %s21, %s24
    %p33 = scmp.eq.s32.totalorder %s16, 1
    %p34 = por %p32, %p33
    %p35 = scmp.ne.s32.totalorder %s24, %s25
    %p36 = scmp.eq.s32.totalorder %s16, 0
    %p37 = por %p35, %p36
    %p38 = scmp.ne.s32.totalorder %s24, %s25
    %p39 = scmp.eq.s32.totalorder %s17, 1
    %p40 = por %p38, %p39
    %p42 = scmp.ne.s32.totalorder %s25, %s41
    %p43 = scmp.eq.s32.totalorder %s17, 0
    %p44 = por %p42, %p43
    %s46 = sadd.s32 %s45, 1
    %p49 = scmp.eq.s32.totalorder %s11, 1
    %p50 = scmp.ne.s32.totalorder %s45, %s47
    %p51 = scmp.eq.s32.totalorder %s11, 0
    %p52 = por %p50, %p51
    %p53 = scmp.ne.s32.totalorder %s45, %s47
    %p54 = scmp.eq.s32.totalorder %s16, 1
    %p55 = por %p53, %p54
    %p56 = scmp.ne.s32.totalorder %s47, %s48
    %p57 = scmp.eq.s32.totalorder %s16, 0
    %p58 = por %p56, %p57
    %p59 = scmp.ne.s32.totalorder %s47, %s48
    %p60 = scmp.eq.s32.totalorder %s17, 1
    %p61 = por %p59, %p60
    %p63 = scmp.ne.s32.totalorder %s48, %s62
    %p64 = scmp.eq.s32.totalorder %s17, 0
    %p65 = por %p63, %p64
    %s67 = sadd.s32 %s66, 1
    %p70 = scmp.eq.s32.totalorder %s11, 1
    %p71 = scmp.ne.s32.totalorder %s66, %s68
    %p72 = scmp.eq.s32.totalorder %s11, 0
    %p73 = por %p71, %p72
    %p74 = scmp.ne.s32.totalorder %s66, %s68
    %p75 = scmp.eq.s32.totalorder %s16, 1
    %p76 = por %p74, %p75
    %p77 = scmp.ne.s32.totalorder %s68, %s69
    %p78 = scmp.eq.s32.totalorder %s16, 0
    %p79 = por %p77, %p78
    %p80 = scmp.ne.s32.totalorder %s68, %s69
    %p81 = scmp.eq.s32.totalorder %s17, 1
    %p82 = por %p80, %p81
    %p84 = scmp.ne.s32.totalorder %s69, %s83
    %p85 = scmp.eq.s32.totalorder %s17, 0
    %p86 = por %p84, %p85
    %s88 = sadd.s32 %s87, 1
    %p91 = scmp.eq.s32.totalorder %s11, 1
    %p92 = scmp.ne.s32.totalorder %s87, %s89
    %p93 = scmp.eq.s32.totalorder %s11, 0
    %p94 = por %p92, %p93
    %p95 = scmp.ne.s32.totalorder %s87, %s89
    %p96 = scmp.eq.s32.totalorder %s16, 1
    %p97 = por %p95, %p96
    %p98 = scmp.ne.s32.totalorder %s89, %s90
    %p99 = scmp.eq.s32.totalorder %s16, 0
    %p100 = por %p98, %p99
    %p101 = scmp.ne.s32.totalorder %s89, %s90
    %p102 = scmp.eq.s32.totalorder %s17, 1
    %p103 = por %p101, %p102
    %p105 = scmp.ne.s32.totalorder %s90, %s104
    %p106 = scmp.eq.s32.totalorder %s17, 0
    %p107 = por %p105, %p106
    %s109 = sadd.s32 %s108, 1
    %p112 = scmp.eq.s32.totalorder %s11, 1
    %p113 = scmp.ne.s32.totalorder %s108, %s110
    %p114 = scmp.eq.s32.totalorder %s11, 0
    %p115 = por %p113, %p114
    %p116 = scmp.ne.s32.totalorder %s108, %s110
    %p117 = scmp.eq.s32.totalorder %s16, 1
    %p118 = por %p116, %p117
    %p119 = scmp.ne.s32.totalorder %s110, %s111
    %p120 = scmp.eq.s32.totalorder %s16, 0
    %p121 = por %p119, %p120
    %p122 = scmp.ne.s32.totalorder %s110, %s111
    %p123 = scmp.eq.s32.totalorder %s17, 1
    %p124 = por %p122, %p123
    %p126 = scmp.ne.s32.totalorder %s111, %s125
    %p127 = scmp.eq.s32.totalorder %s17, 0
    %p128 = por %p126, %p127
    %s129 = ssub.s32 %s11, %s18
    %p130 = scmp.eq.s32.totalorder %s129, 0
    %s132 = sadd.s32 %s131, 1
    %s133 = scalar_select %p130, %s131, %s132
    %p136 = pneg %p130
    %p137 = scmp.eq.s32.totalorder %s11, 1
    %p138 = por %p136, %p137
    %p139 = scmp.ne.s32.totalorder %s131, %s134
    %p140 = scmp.eq.s32.totalorder %s11, 0
    %p141 = por %p139, %p140
    %p142 = scmp.ne.s32.totalorder %s131, %s134
    %p143 = scmp.eq.s32.totalorder %s16, 1
    %p144 = por %p142, %p143
    %p145 = scmp.ne.s32.totalorder %s134, %s135
    %p146 = scmp.eq.s32.totalorder %s16, 0
    %p147 = por %p145, %p146
    %p148 = scmp.ne.s32.totalorder %s134, %s135
    %p149 = scmp.eq.s32.totalorder %s17, 1
    %p150 = por %p148, %p149
    %p152 = scmp.ne.s32.totalorder %s135, %s151
    %p153 = scmp.eq.s32.totalorder %s17, 0
    %p154 = por %p152, %p153
    %p155 = scmp.le.s32.totalorder 1, %s11
    %p156 = scmp.lt.s32.totalorder %s11, 3
    %p157 = pnand %p155, %p156
    %p158 = pneg %p157
    // Predicated region
    $region9: #{residual_block.1} parent=5 // pred_check
      _
    $region10: #{residual_block.1} parent=5 // pred_check_branch
      %160 = sbr.rel (%p157) target = $region12
    $region11: #{residual_block.1} parent=5 // pred_region
      %s161 = ssub.s32 %s11, 1
      // Predicated region
      $region13: #{residual_block.1} parent=11 // pred_check
        %p162 = pneg %p58
      $region14: #{residual_block.1} parent=11 // pred_check_branch
        %164 = sbr.rel (%p162) target = $region16
      $region15: #{residual_block.1} parent=11 // pred_region
        _
      $region16: #{residual_block.1} parent=11 // pred_fallthru
        _
      // Predicated region
      $region17: #{residual_block.1} parent=11 // pred_check
        %p165 = pneg %p79
      $region18: #{residual_block.1} parent=11 // pred_check_branch
        %167 = sbr.rel (%p165) target = $region20
      $region19: #{residual_block.1} parent=11 // pred_region
        _
      $region20: #{residual_block.1} parent=11 // pred_fallthru
        _
      // Predicated region
      $region21: #{residual_block.1} parent=11 // pred_check
        %p168 = pneg %p100
      $region22: #{residual_block.1} parent=11 // pred_check_branch
        %170 = sbr.rel (%p168) target = $region24
      $region23: #{residual_block.1} parent=11 // pred_region
        _
      $region24: #{residual_block.1} parent=11 // pred_fallthru
        _
      // Predicated region
      $region25: #{residual_block.1} parent=11 // pred_check
        %p171 = pneg %p121
      $region26: #{residual_block.1} parent=11 // pred_check_branch
        %173 = sbr.rel (%p171) target = $region28
      $region27: #{residual_block.1} parent=11 // pred_region
        _
      $region28: #{residual_block.1} parent=11 // pred_fallthru
        _
    $region12: #{residual_block.1} parent=5 // pred_fallthru
      _
    %p174 = scmp.lt.s32.totalorder %s11, 2
    // Predicated region
    $region29: #{residual_block.1} parent=5 // pred_check
      %p175 = pneg %p174
    $region30: #{residual_block.1} parent=5 // pred_check_branch
      %177 = sbr.rel (%p175) target = $region32
    $region31: #{residual_block.1} parent=5 // pred_region
      // Predicated region
      $region33: #{residual_block.1} parent=31 // pred_check
        %p178 = pneg %p31
      $region34: #{residual_block.1} parent=31 // pred_check_branch
        %180 = sbr.rel (%p178) target = $region36
      $region35: #{residual_block.1} parent=31 // pred_region
        %p181 = scmp.lt.s32.totalorder %s11, 1
        %s182 = scalar_select %p181, %s11, 1
        %s183 = smul.addr %s182, 32
        %s184 = smul.addr %s183, 8
        %s185 = scalar_lea.vmem %s0, %s184
      $region36: #{residual_block.1} parent=31 // pred_fallthru
        _
    $region32: #{residual_block.1} parent=5 // pred_fallthru
      _
    %p186 = scmp.le.s32.totalorder 1, %s11
    %p187 = scmp.lt.s32.totalorder %s11, 3
    %p188 = pnand %p186, %p187
    %p189 = pneg %p188
    // Predicated region
    $region37: #{residual_block.1} parent=5 // pred_check
      _
    $region38: #{residual_block.1} parent=5 // pred_check_branch
      %191 = sbr.rel (%p188) target = $region40
    $region39: #{residual_block.1} parent=5 // pred_region
      %s192 = ssub.s32 %s11, 1
      %p193 = scmp.lt.s32.totalorder %s16, 1
      %s194 = scalar_select %p193, %s16, 1
      %s195 = smul.addr %s194, 32
      %s196 = smul.addr %s195, 8
      %s197 = scalar_lea.vmem %s0, %s196
      %p198 = pneg %p37
      %p199 = pneg %p34
      %p200 = pneg %p58
      %p201 = pneg %p55
      %p202 = pneg %p79
      %p203 = pneg %p76
      %p204 = pneg %p100
      %p205 = pneg %p97
      %p206 = pneg %p121
      %p207 = pneg %p118
      %p208 = pneg %p147
      %p209 = pneg %p144
      %p210 = scmp.lt.s32.totalorder %s16, 1
      %s211 = scalar_select %p210, %s16, 1
      %s212 = smul.addr %s211, 32
      %s213 = smul.addr %s212, 8
      %s214 = scalar_lea.vmem %s5, %s213
      %p215 = scmp.lt.s32.totalorder %s16, 1
      %s216 = scalar_select %p215, %s16, 1
      %s217 = smul.addr %s216, 32
      %s218 = smul.addr %s217, 8
      %s219 = scalar_lea.vmem %s0, %s218
      %p220 = scmp.lt.s32.totalorder %s16, 1
      %s221 = scalar_select %p220, %s16, 1
      %s222 = smul.addr %s221, 32
      %s223 = smul.addr %s222, 8
      %s224 = scalar_lea.vmem %s5, %s223
      %v226 = vld [vmem:[%s219] sm:$0xff]
      %v227 = vld [vmem:[%s219 + $0x8] sm:$0xff]
      %v228 = vld [vmem:[%s219 + $0x10] sm:$0xff]
      %v229 = vld [vmem:[%s219 + $0x18] sm:$0xff]
      %v230 = vld [vmem:[%s219 + $0x20] sm:$0xff]
      %v231 = vld [vmem:[%s219 + $0x28] sm:$0xff]
      %v232 = vld [vmem:[%s219 + $0x30] sm:$0xff]
      %v233 = vld [vmem:[%s219 + $0x38] sm:$0xff]
      %v234 = vld [vmem:[%s219 + $0x40] sm:$0xff]
      %v235 = vld [vmem:[%s219 + $0x48] sm:$0xff]
      %v236 = vld [vmem:[%s219 + $0x50] sm:$0xff]
      %v237 = vld [vmem:[%s219 + $0x58] sm:$0xff]
      %v238 = vld [vmem:[%s219 + $0x60] sm:$0xff]
      %v239 = vld [vmem:[%s219 + $0x68] sm:$0xff]
      %v240 = vld [vmem:[%s219 + $0x70] sm:$0xff]
      %v241 = vld [vmem:[%s219 + $0x78] sm:$0xff]
      %v242 = vld [vmem:[%s219 + $0x80] sm:$0xff]
      %v243 = vld [vmem:[%s219 + $0x88] sm:$0xff]
      %v244 = vld [vmem:[%s219 + $0x90] sm:$0xff]
      %v245 = vld [vmem:[%s219 + $0x98] sm:$0xff]
      %v246 = vld [vmem:[%s219 + $0xa0] sm:$0xff]
      %v247 = vld [vmem:[%s219 + $0xa8] sm:$0xff]
      %v248 = vld [vmem:[%s219 + $0xb0] sm:$0xff]
      %v249 = vld [vmem:[%s219 + $0xb8] sm:$0xff]
      %v250 = vld [vmem:[%s219 + $0xc0] sm:$0xff]
      %v251 = vld [vmem:[%s219 + $0xc8] sm:$0xff]
      %v252 = vld [vmem:[%s219 + $0xd0] sm:$0xff]
      %v253 = vld [vmem:[%s219 + $0xd8] sm:$0xff]
      %v254 = vld [vmem:[%s219 + $0xe0] sm:$0xff]
      %v255 = vld [vmem:[%s219 + $0xe8] sm:$0xff]
      %v256 = vld [vmem:[%s219 + $0xf0] sm:$0xff]
      %v257 = vld [vmem:[%s219 + $0xf8] sm:$0xff]
      %v258 = vld [vmem:[%s1] sm:$0xf]
      %v259 = vld [vmem:[%s1 + $0x4] sm:$0x3]
      %v260 = vld [vmem:[%s1 + $0x8] sm:$0xf]
      %v261 = vld [vmem:[%s1 + $0xc] sm:$0x3]
      %v262 = vld [vmem:[%s1 + $0x10] sm:$0xf]
      %v263 = vld [vmem:[%s1 + $0x14] sm:$0x3]
      %v264 = vld [vmem:[%s3] sm:$0xf]
      %v265 = vld [vmem:[%s3 + $0x4] sm:$0x3]
      %v266 = vld [vmem:[%s3 + $0x8] sm:$0xf]
      %v267 = vld [vmem:[%s3 + $0xc] sm:$0x3]
      %v268 = vld [vmem:[%s3 + $0x10] sm:$0xf]
      %v269 = vld [vmem:[%s3 + $0x14] sm:$0x3]
      %v270 = vld [vmem:[%s2] sm:$0x1]
      %v271 = vpack.c.bf16 %v227, %v226
      %v272 = vpack.c.bf16 %v229, %v228
      %v273 = vpack.c.bf16 %v231, %v230
      %v274 = vpack.c.bf16 %v233, %v232
      %v275 = vpack.c.bf16 %v235, %v234
      %v276 = vpack.c.bf16 %v237, %v236
      %v277 = vpack.c.bf16 %v239, %v238
      %v278 = vpack.c.bf16 %v241, %v240
      %v279 = vpack.c.bf16 %v243, %v242
      %v280 = vpack.c.bf16 %v245, %v244
      %v281 = vpack.c.bf16 %v247, %v246
      %v282 = vpack.c.bf16 %v249, %v248
      %v283 = vpack.c.bf16 %v251, %v250
      %v284 = vpack.c.bf16 %v253, %v252
      %v285 = vpack.c.bf16 %v255, %v254
      %v286 = vpack.c.bf16 %v257, %v256
      %v288 = vshrl.u32 %v271, 16
      %v291 = vshrl.u32 %v272, 16
      %v294 = vshrl.u32 %v273, 16
      %v297 = vshrl.u32 %v274, 16
      %v300 = vshrl.u32 %v275, 16
      %v303 = vshrl.u32 %v276, 16
      %v306 = vshrl.u32 %v277, 16
      %v309 = vshrl.u32 %v278, 16
      %v312 = vshrl.u32 %v279, 16
      %v315 = vshrl.u32 %v280, 16
      %v318 = vshrl.u32 %v281, 16
      %v321 = vshrl.u32 %v282, 16
      %v324 = vshrl.u32 %v283, 16
      %v327 = vshrl.u32 %v284, 16
      %v330 = vshrl.u32 %v285, 16
      %v333 = vshrl.u32 %v286, 16
      %v351 = vrot.slane %v288, 7
      %v352 = vshll.u32 %v271, 16
      %v354 = vor.u32 %v351, %v352
      %v355 = vrot.slane %v291, 7
      %v356 = vshll.u32 %v272, 16
      %v358 = vor.u32 %v355, %v356
      %v359 = vrot.slane %v294, 7
      %v360 = vshll.u32 %v273, 16
      %v362 = vor.u32 %v359, %v360
      %v363 = vrot.slane %v297, 7
      %v364 = vshll.u32 %v274, 16
      %v366 = vor.u32 %v363, %v364
      %v367 = vrot.slane %v300, 7
      %v368 = vshll.u32 %v275, 16
      %v370 = vor.u32 %v367, %v368
      %v371 = vrot.slane %v303, 7
      %v372 = vshll.u32 %v276, 16
      %v374 = vor.u32 %v371, %v372
      %v375 = vrot.slane %v306, 7
      %v376 = vshll.u32 %v277, 16
      %v378 = vor.u32 %v375, %v376
      %v379 = vrot.slane %v309, 7
      %v380 = vshll.u32 %v278, 16
      %v382 = vor.u32 %v379, %v380
      %v383 = vrot.slane %v312, 7
      %v384 = vshll.u32 %v279, 16
      %v386 = vor.u32 %v383, %v384
      %v387 = vrot.slane %v315, 7
      %v388 = vshll.u32 %v280, 16
      %v390 = vor.u32 %v387, %v388
      %v391 = vrot.slane %v318, 7
      %v392 = vshll.u32 %v281, 16
      %v394 = vor.u32 %v391, %v392
      %v395 = vrot.slane %v321, 7
      %v396 = vshll.u32 %v282, 16
      %v398 = vor.u32 %v395, %v396
      %v399 = vrot.slane %v324, 7
      %v400 = vshll.u32 %v283, 16
      %v402 = vor.u32 %v399, %v400
      %v403 = vrot.slane %v327, 7
      %v404 = vshll.u32 %v284, 16
      %v406 = vor.u32 %v403, %v404
      %v407 = vrot.slane %v330, 7
      %v408 = vshll.u32 %v285, 16
      %v410 = vor.u32 %v407, %v408
      %v411 = vrot.slane %v333, 7
      %v412 = vshll.u32 %v286, 16
      %v414 = vor.u32 %v411, %v412
      %vm431 = vcmask 1040384
      %vm432 = vsmask.f32 256
      %vm433 = vmand %vm431, %vm432
      %v434 = vsel %vm433, %v288, %v354
      %v435 = vsel %vm433, %v291, %v358
      %v436 = vsel %vm433, %v294, %v362
      %v437 = vsel %vm433, %v297, %v366
      %v438 = vsel %vm433, %v300, %v370
      %v439 = vsel %vm433, %v303, %v374
      %v440 = vsel %vm433, %v306, %v378
      %v441 = vsel %vm433, %v309, %v382
      %v442 = vsel %vm433, %v312, %v386
      %v443 = vsel %vm433, %v315, %v390
      %v444 = vsel %vm433, %v318, %v394
      %v445 = vsel %vm433, %v321, %v398
      %v446 = vsel %vm433, %v324, %v402
      %v447 = vsel %vm433, %v327, %v406
      %v448 = vsel %vm433, %v330, %v410
      %v449 = vsel %vm433, %v333, %v414
      %v450 = vrot.slane %v352, 1
      %v451 = vor.u32 %v288, %v450
      %v452 = vrot.slane %v356, 1
      %v453 = vor.u32 %v291, %v452
      %v454 = vrot.slane %v360, 1
      %v455 = vor.u32 %v294, %v454
      %v456 = vrot.slane %v364, 1
      %v457 = vor.u32 %v297, %v456
      %v458 = vrot.slane %v368, 1
      %v459 = vor.u32 %v300, %v458
      %v460 = vrot.slane %v372, 1
      %v461 = vor.u32 %v303, %v460
      %v462 = vrot.slane %v376, 1
      %v463 = vor.u32 %v306, %v462
      %v464 = vrot.slane %v380, 1
      %v465 = vor.u32 %v309, %v464
      %v466 = vrot.slane %v384, 1
      %v467 = vor.u32 %v312, %v466
      %v468 = vrot.slane %v388, 1
      %v469 = vor.u32 %v315, %v468
      %v470 = vrot.slane %v392, 1
      %v471 = vor.u32 %v318, %v470
      %v472 = vrot.slane %v396, 1
      %v473 = vor.u32 %v321, %v472
      %v474 = vrot.slane %v400, 1
      %v475 = vor.u32 %v324, %v474
      %v476 = vrot.slane %v404, 1
      %v477 = vor.u32 %v327, %v476
      %v478 = vrot.slane %v408, 1
      %v479 = vor.u32 %v330, %v478
      %v480 = vrot.slane %v412, 1
      %v481 = vor.u32 %v333, %v480
      %vm514 = vcmask 1047552
      %vm515 = vsmask.f32 7424
      %vm516 = vmand %vm514, %vm515
      %v517 = vsel %vm516, %v451, %v352
      %v518 = vsel %vm516, %v453, %v356
      %v519 = vsel %vm516, %v455, %v360
      %v520 = vsel %vm516, %v457, %v364
      %v521 = vsel %vm516, %v459, %v368
      %v522 = vsel %vm516, %v461, %v372
      %v523 = vsel %vm516, %v463, %v376
      %v524 = vsel %vm516, %v465, %v380
      %v525 = vsel %vm516, %v467, %v384
      %v526 = vsel %vm516, %v469, %v388
      %v527 = vsel %vm516, %v471, %v392
      %v528 = vsel %vm516, %v473, %v396
      %v529 = vsel %vm516, %v475, %v400
      %v530 = vsel %vm516, %v477, %v404
      %v531 = vsel %vm516, %v479, %v408
      %v532 = vsel %vm516, %v481, %v412
      %549 = vrot.lane.b32.xlu0 %v271, 4
      %v550 = vpop.permute.xlu0 %549
      %551 = vrot.lane.b32.xlu0 %v272, 4
      %v552 = vpop.permute.xlu0 %551
      %553 = vrot.lane.b32.xlu0 %v273, 4
      %v554 = vpop.permute.xlu0 %553
      %555 = vrot.lane.b32.xlu0 %v274, 4
      %v556 = vpop.permute.xlu0 %555
      %557 = vrot.lane.b32.xlu0 %v275, 4
      %v558 = vpop.permute.xlu0 %557
      %559 = vrot.lane.b32.xlu0 %v276, 4
      %v560 = vpop.permute.xlu0 %559
      %561 = vrot.lane.b32.xlu0 %v277, 4
      %v562 = vpop.permute.xlu0 %561
      %563 = vrot.lane.b32.xlu0 %v278, 4
      %v564 = vpop.permute.xlu0 %563
      %565 = vrot.lane.b32.xlu0 %v279, 4
      %v566 = vpop.permute.xlu0 %565
      %567 = vrot.lane.b32.xlu0 %v280, 4
      %v568 = vpop.permute.xlu0 %567
      %569 = vrot.lane.b32.xlu0 %v281, 4
      %v570 = vpop.permute.xlu0 %569
      %571 = vrot.lane.b32.xlu0 %v282, 4
      %v572 = vpop.permute.xlu0 %571
      %573 = vrot.lane.b32.xlu0 %v283, 4
      %v574 = vpop.permute.xlu0 %573
      %575 = vrot.lane.b32.xlu0 %v284, 4
      %v576 = vpop.permute.xlu0 %575
      %577 = vrot.lane.b32.xlu0 %v285, 4
      %v578 = vpop.permute.xlu0 %577
      %579 = vrot.lane.b32.xlu0 %v286, 4
      %v580 = vpop.permute.xlu0 %579
      %597 = vrot.lane.b32.xlu0 %v517, 8
      %v598 = vpop.permute.xlu0 %597
      %599 = vrot.lane.b32.xlu0 %v518, 8
      %v600 = vpop.permute.xlu0 %599
      %601 = vrot.lane.b32.xlu0 %v519, 8
      %v602 = vpop.permute.xlu0 %601
      %603 = vrot.lane.b32.xlu0 %v520, 8
      %v604 = vpop.permute.xlu0 %603
      %605 = vrot.lane.b32.xlu0 %v521, 8
      %v606 = vpop.permute.xlu0 %605
      %607 = vrot.lane.b32.xlu0 %v522, 8
      %v608 = vpop.permute.xlu0 %607
      %609 = vrot.lane.b32.xlu0 %v523, 8
      %v610 = vpop.permute.xlu0 %609
      %611 = vrot.lane.b32.xlu0 %v524, 8
      %v612 = vpop.permute.xlu0 %611
      %613 = vrot.lane.b32.xlu0 %v525, 8
      %v614 = vpop.permute.xlu0 %613
      %615 = vrot.lane.b32.xlu0 %v526, 8
      %v616 = vpop.permute.xlu0 %615
      %617 = vrot.lane.b32.xlu0 %v527, 8
      %v618 = vpop.permute.xlu0 %617
      %619 = vrot.lane.b32.xlu0 %v528, 8
      %v620 = vpop.permute.xlu0 %619
      %621 = vrot.lane.b32.xlu0 %v529, 8
      %v622 = vpop.permute.xlu0 %621
      %623 = vrot.lane.b32.xlu0 %v530, 8
      %v624 = vpop.permute.xlu0 %623
      %625 = vrot.lane.b32.xlu0 %v531, 8
      %v626 = vpop.permute.xlu0 %625
      %627 = vrot.lane.b32.xlu0 %v532, 8
      %v628 = vpop.permute.xlu0 %627
      %vm629 = vcmask 31744
      %v632 = vsel %vm629, %v434, %v550
      %v635 = vsel %vm629, %v435, %v552
      %v638 = vsel %vm629, %v436, %v554
      %v641 = vsel %vm629, %v437, %v556
      %v644 = vsel %vm629, %v438, %v558
      %v647 = vsel %vm629, %v439, %v560
      %v650 = vsel %vm629, %v440, %v562
      %v653 = vsel %vm629, %v441, %v564
      %v656 = vsel %vm629, %v442, %v566
      %v659 = vsel %vm629, %v443, %v568
      %v662 = vsel %vm629, %v444, %v570
      %v665 = vsel %vm629, %v445, %v572
      %v668 = vsel %vm629, %v446, %v574
      %v671 = vsel %vm629, %v447, %v576
      %v674 = vsel %vm629, %v448, %v578
      %v677 = vsel %vm629, %v449, %v580
      %vm678 = vcmask 64512
      %v680 = vsel %vm678, %v632, %v598
      %v682 = vsel %vm678, %v635, %v600
      %v684 = vsel %vm678, %v638, %v602
      %v686 = vsel %vm678, %v641, %v604
      %v688 = vsel %vm678, %v644, %v606
      %v690 = vsel %vm678, %v647, %v608
      %v692 = vsel %vm678, %v650, %v610
      %v694 = vsel %vm678, %v653, %v612
      %v696 = vsel %vm678, %v656, %v614
      %v698 = vsel %vm678, %v659, %v616
      %v700 = vsel %vm678, %v662, %v618
      %v702 = vsel %vm678, %v665, %v620
      %v704 = vsel %vm678, %v668, %v622
      %v706 = vsel %vm678, %v671, %v624
      %v708 = vsel %vm678, %v674, %v626
      %v710 = vsel %vm678, %v677, %v628
      %v712 = vlaneseq
      %v713 = vshrl.u32 %v712, 7
      %v714 = vsub.s32 0, %v713
      %v715 = vrot.slane %v270, %v714
      %v719 = vunpack.c.l.b16 %v258
      %v720 = vunpack.c.l.b16 %v259
      %v721 = vpack.c.b16 %v720, %v719
      %vm722 = vcmask 97280
      %v723 = vsel %vm722, %v682, 0
      %v725 = vsel %vm722, %v680, 0
      %v727 = vsel %vm722, %v684, 0
      %v729 = vsel %vm722, %v686, 0
      %v731 = vsel %vm722, %v688, 0
      %v733 = vsel %vm722, %v690, 0
      %v735 = vsel %vm722, %v692, 0
      %v737 = vsel %vm722, %v694, 0
      %v739 = vsel %vm722, %v696, 0
      %v741 = vsel %vm722, %v698, 0
      %v743 = vsel %vm722, %v700, 0
      %v745 = vsel %vm722, %v702, 0
      %v747 = vsel %vm722, %v704, 0
      %v749 = vsel %vm722, %v706, 0
      %v751 = vsel %vm722, %v708, 0
      %vm753 = vcmask 1045504
      %v755 = vsel %vm753, %v721, 0
      %757 = vmatprep.subr.bf16.mxu0 0
      %758 = vmatpush1.bf16.msra.mxu0 %v755
      %759 = vmatprep.subr.bf16.mxu0 0
      %760 = vmatpush1.bf16.msra.mxu0 0
      %761 = vmatprep.subr.bf16.mxu0 0
      %762 = vmatpush1.bf16.msra.mxu0 0
      %763 = vmatprep.subr.bf16.mxu0 0
      %764 = vmatpush1.bf16.msra.mxu0 0
      %765 = vmatprep.subr.bf16.mxu0 0
      %766 = vmatpush1.bf16.msra.mxu0 0
      %767 = vmatprep.subr.bf16.mxu0 0
      %768 = vmatpush1.bf16.msra.mxu0 0
      %769 = vmatprep.subr.bf16.mxu0 0
      %770 = vmatpush1.bf16.msra.mxu0 0
      %771 = vmatprep.subr.bf16.mxu0 0
      %772 = vmatpush1.bf16.msra.mxu0 0
      %773 = vmatprep.subr.bf16.mxu0 0
      %774 = vmatpush1.bf16.msra.mxu0 0
      %775 = vmatprep.subr.bf16.mxu0 0
      %776 = vmatpush1.bf16.msra.mxu0 0
      %777 = vmatprep.subr.bf16.mxu0 0
      %778 = vmatpush1.bf16.msra.mxu0 0
      %779 = vmatprep.subr.bf16.mxu0 0
      %780 = vmatpush1.bf16.msra.mxu0 0
      %781 = vmatprep.subr.bf16.mxu0 0
      %782 = vmatpush1.bf16.msra.mxu0 0
      %783 = vmatprep.subr.bf16.mxu0 0
      %784 = vmatpush1.bf16.msra.mxu0 0
      %785 = vmatprep.subr.bf16.mxu0 0
      %786 = vmatpush1.bf16.msra.mxu0 0
      %787 = vmatprep.subr.bf16.mxu0 0
      %788 = vmatpush1.bf16.msra.mxu0 0
      %789 = vmatprep.mubr.bf16.mxu0 0
      %790 = vmatmul.mubr.bf16.gmra.mrb[0].mxu0 %v723
      %v791 = vpop.f32.mrb[0].mxu0
      %v792 = vadd.f32 0.0, %v791
      %v793 = vpop.f32.mrb[0].mxu0
      %v794 = vpop.f32.mrb[0].mxu0
      %v795 = vadd.f32 0.0, %v794
      %v796 = vpop.f32.mrb[0].mxu0
      %797 = vmatprep.mubr.bf16.mxu0 0
      %798 = vmatmul.mubr.bf16.gmra.mrb[0].mxu0 %v725
      %v799 = vpop.f32.mrb[0].mxu0
      %v800 = vadd.f32 0.0, %v799
      %v801 = vpop.f32.mrb[0].mxu0
      %v802 = vpop.f32.mrb[0].mxu0
      %v803 = vadd.f32 0.0, %v802
      %v804 = vpop.f32.mrb[0].mxu0
      %805 = vmatprep.mubr.bf16.mxu0 0
      %806 = vmatmul.mubr.bf16.gmra.mrb[0].mxu0 %v723
      %v807 = vpop.f32.mrb[0].mxu0
      %v808 = vadd.f32 0.0, %v807
      %v809 = vpop.f32.mrb[0].mxu0
      %v810 = vpop.f32.mrb[0].mxu0
      %v811 = vadd.f32 0.0, %v810
      %v812 = vpop.f32.mrb[0].mxu0
      %813 = vmatprep.mubr.bf16.mxu0 0
      %814 = vmatmul.mubr.bf16.gmra.mrb[0].mxu0 %v727
      %v815 = vpop.f32.mrb[0].mxu0
      %v816 = vadd.f32 0.0, %v815
      %v817 = vpop.f32.mrb[0].mxu0
      %v818 = vpop.f32.mrb[0].mxu0
      %v819 = vadd.f32 0.0, %v818
      %v820 = vpop.f32.mrb[0].mxu0
      %821 = vmatprep.mubr.bf16.mxu0 0
      %822 = vmatmul.mubr.bf16.gmra.mrb[0].mxu0 %v729
      %v823 = vpop.f32.mrb[0].mxu0
      %v824 = vadd.f32 0.0, %v823
      %v825 = vpop.f32.mrb[0].mxu0
      %v826 = vpop.f32.mrb[0].mxu0
      %v827 = vadd.f32 0.0, %v826
      %v828 = vpop.f32.mrb[0].mxu0
      %829 = vmatprep.mubr.bf16.mxu0 0
      %830 = vmatmul.mubr.bf16.gmra.mrb[0].mxu0 %v731
      %v831 = vpop.f32.mrb[0].mxu0
      %v832 = vadd.f32 0.0, %v831
      %v833 = vpop.f32.mrb[0].mxu0
      %v834 = vpop.f32.mrb[0].mxu0
      %v835 = vadd.f32 0.0, %v834
      %v836 = vpop.f32.mrb[0].mxu0
      %837 = vmatprep.mubr.bf16.mxu0 0
      %838 = vmatmul.mubr.bf16.gmra.mrb[0].mxu0 %v733
      %v839 = vpop.f32.mrb[0].mxu0
      %v840 = vadd.f32 0.0, %v839
      %v841 = vpop.f32.mrb[0].mxu0
      %v842 = vpop.f32.mrb[0].mxu0
      %v843 = vadd.f32 0.0, %v842
      %v844 = vpop.f32.mrb[0].mxu0
      %845 = vmatprep.mubr.bf16.mxu0 0
      %846 = vmatmul.mubr.bf16.gmra.mrb[0].mxu0 %v735
      %v847 = vpop.f32.mrb[0].mxu0
      %v848 = vadd.f32 0.0, %v847
      %v849 = vpop.f32.mrb[0].mxu0
      %v850 = vpop.f32.mrb[0].mxu0
      %v851 = vadd.f32 0.0, %v850
      %v852 = vpop.f32.mrb[0].mxu0
      %853 = vmatprep.mubr.bf16.mxu0 0
      %854 = vmatmul.mubr.bf16.gmra.mrb[0].mxu0 %v737
      %v855 = vpop.f32.mrb[0].mxu0
      %v856 = vadd.f32 0.0, %v855
      %v857 = vpop.f32.mrb[0].mxu0
      %v858 = vpop.f32.mrb[0].mxu0
      %v859 = vadd.f32 0.0, %v858
      %v860 = vpop.f32.mrb[0].mxu0
      %861 = vmatprep.mubr.bf16.mxu0 0
      %862 = vmatmul.mubr.bf16.gmra.mrb[0].mxu0 %v739
      %v863 = vpop.f32.mrb[0].mxu0
      %v864 = vadd.f32 0.0, %v863
      %v865 = vpop.f32.mrb[0].mxu0
      %v866 = vpop.f32.mrb[0].mxu0
      %v867 = vadd.f32 0.0, %v866
      %v868 = vpop.f32.mrb[0].mxu0
      %869 = vmatprep.mubr.bf16.mxu0 0
      %870 = vmatmul.mubr.bf16.gmra.mrb[0].mxu0 %v741
      %v871 = vpop.f32.mrb[0].mxu0
      %v872 = vadd.f32 0.0, %v871
      %v873 = vpop.f32.mrb[0].mxu0
      %v874 = vpop.f32.mrb[0].mxu0
      %v875 = vadd.f32 0.0, %v874
      %v876 = vpop.f32.mrb[0].mxu0
      %877 = vmatprep.mubr.bf16.mxu0 0
      %878 = vmatmul.mubr.bf16.gmra.mrb[0].mxu0 %v743
      %v879 = vpop.f32.mrb[0].mxu0
      %v880 = vadd.f32 0.0, %v879
      %v881 = vpop.f32.mrb[0].mxu0
      %v882 = vpop.f32.mrb[0].mxu0
      %v883 = vadd.f32 0.0, %v882
      %v884 = vpop.f32.mrb[0].mxu0
      %885 = vmatprep.mubr.bf16.mxu0 0
      %886 = vmatmul.mubr.bf16.gmra.mrb[0].mxu0 %v745
      %v887 = vpop.f32.mrb[0].mxu0
      %v888 = vadd.f32 0.0, %v887
      %v889 = vpop.f32.mrb[0].mxu0
      %v890 = vpop.f32.mrb[0].mxu0
      %v891 = vadd.f32 0.0, %v890
      %v892 = vpop.f32.mrb[0].mxu0
      %893 = vmatprep.mubr.bf16.mxu0 0
      %894 = vmatmul.mubr.bf16.gmra.mrb[0].mxu0 %v747
      %v895 = vpop.f32.mrb[0].mxu0
      %v896 = vadd.f32 0.0, %v895
      %v897 = vpop.f32.mrb[0].mxu0
      %v898 = vpop.f32.mrb[0].mxu0
      %v899 = vadd.f32 0.0, %v898
      %v900 = vpop.f32.mrb[0].mxu0
      %901 = vmatprep.mubr.bf16.mxu0 0
      %902 = vmatmul.mubr.bf16.gmra.mrb[0].mxu0 %v749
      %v903 = vpop.f32.mrb[0].mxu0
      %v904 = vadd.f32 0.0, %v903
      %v905 = vpop.f32.mrb[0].mxu0
      %v906 = vpop.f32.mrb[0].mxu0
      %v907 = vadd.f32 0.0, %v906
      %v908 = vpop.f32.mrb[0].mxu0
      %909 = vmatprep.mubr.bf16.mxu0 0
      %910 = vmatmul.mubr.bf16.gmra.mrb[0].mxu0 %v751
      %v911 = vpop.f32.mrb[0].mxu0
      %v912 = vadd.f32 0.0, %v911
      %v913 = vpop.f32.mrb[0].mxu0
      %v914 = vpop.f32.mrb[0].mxu0
      %v915 = vadd.f32 0.0, %v914
      %v916 = vpop.f32.mrb[0].mxu0
      %917 = vdwg.mxu0
      %v918 = vadd.f32 %v715, %v792
      %v919 = vadd.f32 %v715, %v795
      %v920 = vadd.f32 %v715, %v800
      %v921 = vadd.f32 %v715, %v803
      %v922 = vadd.f32 %v715, %v808
      %v923 = vadd.f32 %v715, %v811
      %v924 = vadd.f32 %v715, %v816
      %v925 = vadd.f32 %v715, %v819
      %v926 = vadd.f32 %v715, %v824
      %v927 = vadd.f32 %v715, %v827
      %v928 = vadd.f32 %v715, %v832
      %v929 = vadd.f32 %v715, %v835
      %v930 = vadd.f32 %v715, %v840
      %v931 = vadd.f32 %v715, %v843
      %v932 = vadd.f32 %v715, %v848
      %v933 = vadd.f32 %v715, %v851
      %v934 = vadd.f32 %v715, %v856
      %v935 = vadd.f32 %v715, %v859
      %v936 = vadd.f32 %v715, %v864
      %v937 = vadd.f32 %v715, %v867
      %v938 = vadd.f32 %v715, %v872
      %v939 = vadd.f32 %v715, %v875
      %v940 = vadd.f32 %v715, %v880
      %v941 = vadd.f32 %v715, %v883
      %v942 = vadd.f32 %v715, %v888
      %v943 = vadd.f32 %v715, %v891
      %v944 = vadd.f32 %v715, %v896
      %v945 = vadd.f32 %v715, %v899
      %v946 = vadd.f32 %v715, %v904
      %v947 = vadd.f32 %v715, %v907
      %v948 = vadd.f32 %v715, %v912
      %v949 = vadd.f32 %v715, %v915
      %v952 = vunpack.c.l.b16 %v260
      %v953 = vunpack.c.l.b16 %v261
      %v954 = vpack.c.b16 %v953, %v952
      %v955 = vsel %vm722, %v710, 0
      %v958 = vsel %vm753, %v954, 0
      %960 = vmatprep.subr.bf16.mxu0 0
      %961 = vmatpush1.bf16.msra.mxu0 %v958
      %962 = vmatprep.subr.bf16.mxu0 0
      %963 = vmatpush1.bf16.msra.mxu0 0
      %964 = vmatprep.subr.bf16.mxu0 0
      %965 = vmatpush1.bf16.msra.mxu0 0
      %966 = vmatprep.subr.bf16.mxu0 0
      %967 = vmatpush1.bf16.msra.mxu0 0
      %968 = vmatprep.subr.bf16.mxu0 0
      %969 = vmatpush1.bf16.msra.mxu0 0
      %970 = vmatprep.subr.bf16.mxu0 0
      %971 = vmatpush1.bf16.msra.mxu0 0
      %972 = vmatprep.subr.bf16.mxu0 0
      %973 = vmatpush1.bf16.msra.mxu0 0
      %974 = vmatprep.subr.bf16.mxu0 0
      %975 = vmatpush1.bf16.msra.mxu0 0
      %976 = vmatprep.subr.bf16.mxu0 0
      %977 = vmatpush1.bf16.msra.mxu0 0
      %978 = vmatprep.subr.bf16.mxu0 0
      %979 = vmatpush1.bf16.msra.mxu0 0
      %980 = vmatprep.subr.bf16.mxu0 0
      %981 = vmatpush1.bf16.msra.mxu0 0
      %982 = vmatprep.subr.bf16.mxu0 0
      %983 = vmatpush1.bf16.msra.mxu0 0
      %984 = vmatprep.subr.bf16.mxu0 0
      %985 = vmatpush1.bf16.msra.mxu0 0
      %986 = vmatprep.subr.bf16.mxu0 0
      %987 = vmatpush1.bf16.msra.mxu0 0
      %988 = vmatprep.subr.bf16.mxu0 0
      %989 = vmatpush1.bf16.msra.mxu0 0
      %990 = vmatprep.subr.bf16.mxu0 0
      %991 = vmatpush1.bf16.msra.mxu0 0
      %992 = vmatprep.mubr.bf16.mxu0 0
      %993 = vmatmul.mubr.bf16.gmra.mrb[0].mxu0 %v725
      %v994 = vpop.f32.mrb[0].mxu0
      %v995 = vadd.f32 0.0, %v994
      %v996 = vpop.f32.mrb[0].mxu0
      %v997 = vpop.f32.mrb[0].mxu0
      %v998 = vadd.f32 0.0, %v997
      %v999 = vpop.f32.mrb[0].mxu0
      %1000 = vmatprep.mubr.bf16.mxu0 0
      %1001 = vmatmul.mubr.bf16.gmra.mrb[0].mxu0 %v723
      %v1002 = vpop.f32.mrb[0].mxu0
      %v1003 = vadd.f32 0.0, %v1002
      %v1004 = vpop.f32.mrb[0].mxu0
      %v1005 = vpop.f32.mrb[0].mxu0
      %v1006 = vadd.f32 0.0, %v1005
      %v1007 = vpop.f32.mrb[0].mxu0
      %1008 = vmatprep.mubr.bf16.mxu0 0
      %1009 = vmatmul.mubr.bf16.gmra.mrb[0].mxu0 %v727
      %v1010 = vpop.f32.mrb[0].mxu0
      %v1011 = vadd.f32 0.0, %v1010
      %v1012 = vpop.f32.mrb[0].mxu0
      %v1013 = vpop.f32.mrb[0].mxu0
      %v1014 = vadd.f32 0.0, %v1013
      %v1015 = vpop.f32.mrb[0].mxu0
      %1016 = vmatprep.mubr.bf16.mxu0 0
      %1017 = vmatmul.mubr.bf16.gmra.mrb[0].mxu0 %v729
      %v1018 = vpop.f32.mrb[0].mxu0
      %v1019 = vadd.f32 0.0, %v1018
      %v1020 = vpop.f32.mrb[0].mxu0
      %v1021 = vpop.f32.mrb[0].mxu0
      %v1022 = vadd.f32 0.0, %v1021
      %v1023 = vpop.f32.mrb[0].mxu0
      %1024 = vmatprep.mubr.bf16.mxu0 0
      %1025 = vmatmul.mubr.bf16.gmra.mrb[0].mxu0 %v731
      %v1026 = vpop.f32.mrb[0].mxu0
      %v1027 = vadd.f32 0.0, %v1026
      %v1028 = vpop.f32.mrb[0].mxu0
      %v1029 = vpop.f32.mrb[0].mxu0
      %v1030 = vadd.f32 0.0, %v1029
      %v1031 = vpop.f32.mrb[0].mxu0
      %1032 = vmatprep.mubr.bf16.mxu0 0
      %1033 = vmatmul.mubr.bf16.gmra.mrb[0].mxu0 %v733
      %v1034 = vpop.f32.mrb[0].mxu0
      %v1035 = vadd.f32 0.0, %v1034
      %v1036 = vpop.f32.mrb[0].mxu0
      %v1037 = vpop.f32.mrb[0].mxu0
      %v1038 = vadd.f32 0.0, %v1037
      %v1039 = vpop.f32.mrb[0].mxu0
      %1040 = vmatprep.mubr.bf16.mxu0 0
      %1041 = vmatmul.mubr.bf16.gmra.mrb[0].mxu0 %v735
      %v1042 = vpop.f32.mrb[0].mxu0
      %v1043 = vadd.f32 0.0, %v1042
      %v1044 = vpop.f32.mrb[0].mxu0
      %v1045 = vpop.f32.mrb[0].mxu0
      %v1046 = vadd.f32 0.0, %v1045
      %v1047 = vpop.f32.mrb[0].mxu0
      %1048 = vmatprep.mubr.bf16.mxu0 0
      %1049 = vmatmul.mubr.bf16.gmra.mrb[0].mxu0 %v737
      %v1050 = vpop.f32.mrb[0].mxu0
      %v1051 = vadd.f32 0.0, %v1050
      %v1052 = vpop.f32.mrb[0].mxu0
      %v1053 = vpop.f32.mrb[0].mxu0
      %v1054 = vadd.f32 0.0, %v1053
      %v1055 = vpop.f32.mrb[0].mxu0
      %1056 = vmatprep.mubr.bf16.mxu0 0
      %1057 = vmatmul.mubr.bf16.gmra.mrb[0].mxu0 %v739
      %v1058 = vpop.f32.mrb[0].mxu0
      %v1059 = vadd.f32 0.0, %v1058
      %v1060 = vpop.f32.mrb[0].mxu0
      %v1061 = vpop.f32.mrb[0].mxu0
      %v1062 = vadd.f32 0.0, %v1061
      %v1063 = vpop.f32.mrb[0].mxu0
      %1064 = vmatprep.mubr.bf16.mxu0 0
      %1065 = vmatmul.mubr.bf16.gmra.mrb[0].mxu0 %v741
      %v1066 = vpop.f32.mrb[0].mxu0
      %v1067 = vadd.f32 0.0, %v1066
      %v1068 = vpop.f32.mrb[0].mxu0
      %v1069 = vpop.f32.mrb[0].mxu0
      %v1070 = vadd.f32 0.0, %v1069
      %v1071 = vpop.f32.mrb[0].mxu0
      %1072 = vmatprep.mubr.bf16.mxu0 0
      %1073 = vmatmul.mubr.bf16.gmra.mrb[0].mxu0 %v743
      %v1074 = vpop.f32.mrb[0].mxu0
      %v1075 = vadd.f32 0.0, %v1074
      %v1076 = vpop.f32.mrb[0].mxu0
      %v1077 = vpop.f32.mrb[0].mxu0
      %v1078 = vadd.f32 0.0, %v1077
      %v1079 = vpop.f32.mrb[0].mxu0
      %1080 = vmatprep.mubr.bf16.mxu0 0
      %1081 = vmatmul.mubr.bf16.gmra.mrb[0].mxu0 %v745
      %v1082 = vpop.f32.mrb[0].mxu0
      %v1083 = vadd.f32 0.0, %v1082
      %v1084 = vpop.f32.mrb[0].mxu0
      %v1085 = vpop.f32.mrb[0].mxu0
      %v1086 = vadd.f32 0.0, %v1085
      %v1087 = vpop.f32.mrb[0].mxu0
      %1088 = vmatprep.mubr.bf16.mxu0 0
      %1089 = vmatmul.mubr.bf16.gmra.mrb[0].mxu0 %v747
      %v1090 = vpop.f32.mrb[0].mxu0
      %v1091 = vadd.f32 0.0, %v1090
      %v1092 = vpop.f32.mrb[0].mxu0
      %v1093 = vpop.f32.mrb[0].mxu0
      %v1094 = vadd.f32 0.0, %v1093
      %v1095 = vpop.f32.mrb[0].mxu0
      %1096 = vmatprep.mubr.bf16.mxu0 0
      %1097 = vmatmul.mubr.bf16.gmra.mrb[0].mxu0 %v749
      %v1098 = vpop.f32.mrb[0].mxu0
      %v1099 = vadd.f32 0.0, %v1098
      %v1100 = vpop.f32.mrb[0].mxu0
      %v1101 = vpop.f32.mrb[0].mxu0
      %v1102 = vadd.f32 0.0, %v1101
      %v1103 = vpop.f32.mrb[0].mxu0
      %1104 = vmatprep.mubr.bf16.mxu0 0
      %1105 = vmatmul.mubr.bf16.gmra.mrb[0].mxu0 %v751
      %v1106 = vpop.f32.mrb[0].mxu0
      %v1107 = vadd.f32 0.0, %v1106
      %v1108 = vpop.f32.mrb[0].mxu0
      %v1109 = vpop.f32.mrb[0].mxu0
      %v1110 = vadd.f32 0.0, %v1109
      %v1111 = vpop.f32.mrb[0].mxu0
      %1112 = vmatprep.mubr.bf16.mxu0 0
      %1113 = vmatmul.mubr.bf16.gmra.mrb[0].mxu0 %v955
      %v1114 = vpop.f32.mrb[0].mxu0
      %v1115 = vadd.f32 0.0, %v1114
      %v1116 = vpop.f32.mrb[0].mxu0
      %v1117 = vpop.f32.mrb[0].mxu0
      %v1118 = vadd.f32 0.0, %v1117
      %v1119 = vpop.f32.mrb[0].mxu0
      %1120 = vdwg.mxu0
      %v1121 = vadd.f32 %v918, %v995
      %v1122 = vadd.f32 %v919, %v998
      %v1123 = vadd.f32 %v920, %v1003
      %v1124 = vadd.f32 %v921, %v1006
      %v1125 = vadd.f32 %v922, %v1011
      %v1126 = vadd.f32 %v923, %v1014
      %v1127 = vadd.f32 %v924, %v1019
      %v1128 = vadd.f32 %v925, %v1022
      %v1129 = vadd.f32 %v926, %v1027
      %v1130 = vadd.f32 %v927, %v1030
      %v1131 = vadd.f32 %v928, %v1035
      %v1132 = vadd.f32 %v929, %v1038
      %v1133 = vadd.f32 %v930, %v1043
      %v1134 = vadd.f32 %v931, %v1046
      %v1135 = vadd.f32 %v932, %v1051
      %v1136 = vadd.f32 %v933, %v1054
      %v1137 = vadd.f32 %v934, %v1059
      %v1138 = vadd.f32 %v935, %v1062
      %v1139 = vadd.f32 %v936, %v1067
      %v1140 = vadd.f32 %v937, %v1070
      %v1141 = vadd.f32 %v938, %v1075
      %v1142 = vadd.f32 %v939, %v1078
      %v1143 = vadd.f32 %v940, %v1083
      %v1144 = vadd.f32 %v941, %v1086
      %v1145 = vadd.f32 %v942, %v1091
      %v1146 = vadd.f32 %v943, %v1094
      %v1147 = vadd.f32 %v944, %v1099
      %v1148 = vadd.f32 %v945, %v1102
      %v1149 = vadd.f32 %v946, %v1107
      %v1150 = vadd.f32 %v947, %v1110
      %v1151 = vadd.f32 %v948, %v1115
      %v1152 = vadd.f32 %v949, %v1118
      %v1155 = vunpack.c.l.b16 %v262
      %v1156 = vunpack.c.l.b16 %v263
      %v1157 = vpack.c.b16 %v1156, %v1155
      %v1159 = vsel %vm753, %v1157, 0
      %1161 = vmatprep.subr.bf16.mxu0 0
      %1162 = vmatpush1.bf16.msra.mxu0 %v1159
      %1163 = vmatprep.subr.bf16.mxu0 0
      %1164 = vmatpush1.bf16.msra.mxu0 0
      %1165 = vmatprep.subr.bf16.mxu0 0
      %1166 = vmatpush1.bf16.msra.mxu0 0
      %1167 = vmatprep.subr.bf16.mxu0 0
      %1168 = vmatpush1.bf16.msra.mxu0 0
      %1169 = vmatprep.subr.bf16.mxu0 0
      %1170 = vmatpush1.bf16.msra.mxu0 0
      %1171 = vmatprep.subr.bf16.mxu0 0
      %1172 = vmatpush1.bf16.msra.mxu0 0
      %1173 = vmatprep.subr.bf16.mxu0 0
      %1174 = vmatpush1.bf16.msra.mxu0 0
      %1175 = vmatprep.subr.bf16.mxu0 0
      %1176 = vmatpush1.bf16.msra.mxu0 0
      %1177 = vmatprep.subr.bf16.mxu0 0
      %1178 = vmatpush1.bf16.msra.mxu0 0
      %1179 = vmatprep.subr.bf16.mxu0 0
      %1180 = vmatpush1.bf16.msra.mxu0 0
      %1181 = vmatprep.subr.bf16.mxu0 0
      %1182 = vmatpush1.bf16.msra.mxu0 0
      %1183 = vmatprep.subr.bf16.mxu0 0
      %1184 = vmatpush1.bf16.msra.mxu0 0
      %1185 = vmatprep.subr.bf16.mxu0 0
      %1186 = vmatpush1.bf16.msra.mxu0 0
      %1187 = vmatprep.subr.bf16.mxu0 0
      %1188 = vmatpush1.bf16.msra.mxu0 0
      %1189 = vmatprep.subr.bf16.mxu0 0
      %1190 = vmatpush1.bf16.msra.mxu0 0
      %1191 = vmatprep.subr.bf16.mxu0 0
      %1192 = vmatpush1.bf16.msra.mxu0 0
      %1193 = vmatprep.mubr.bf16.mxu0 0
      %1194 = vmatmul.mubr.bf16.gmra.mrb[0].mxu0 %v723
      %v1195 = vpop.f32.mrb[0].mxu0
      %v1196 = vadd.f32 0.0, %v1195
      %v1197 = vpop.f32.mrb[0].mxu0
      %v1198 = vpop.f32.mrb[0].mxu0
      %v1199 = vadd.f32 0.0, %v1198
      %v1200 = vpop.f32.mrb[0].mxu0
      %1201 = vmatprep.mubr.bf16.mxu0 0
      %1202 = vmatmul.mubr.bf16.gmra.mrb[0].mxu0 %v727
      %v1203 = vpop.f32.mrb[0].mxu0
      %v1204 = vadd.f32 0.0, %v1203
      %v1205 = vpop.f32.mrb[0].mxu0
      %v1206 = vpop.f32.mrb[0].mxu0
      %v1207 = vadd.f32 0.0, %v1206
      %v1208 = vpop.f32.mrb[0].mxu0
      %1209 = vmatprep.mubr.bf16.mxu0 0
      %1210 = vmatmul.mubr.bf16.gmra.mrb[0].mxu0 %v729
      %v1211 = vpop.f32.mrb[0].mxu0
      %v1212 = vadd.f32 0.0, %v1211
      %v1213 = vpop.f32.mrb[0].mxu0
      %v1214 = vpop.f32.mrb[0].mxu0
      %v1215 = vadd.f32 0.0, %v1214
      %v1216 = vpop.f32.mrb[0].mxu0
      %1217 = vmatprep.mubr.bf16.mxu0 0
      %1218 = vmatmul.mubr.bf16.gmra.mrb[0].mxu0 %v731
      %v1219 = vpop.f32.mrb[0].mxu0
      %v1220 = vadd.f32 0.0, %v1219
      %v1221 = vpop.f32.mrb[0].mxu0
      %v1222 = vpop.f32.mrb[0].mxu0
      %v1223 = vadd.f32 0.0, %v1222
      %v1224 = vpop.f32.mrb[0].mxu0
      %1225 = vmatprep.mubr.bf16.mxu0 0
      %1226 = vmatmul.mubr.bf16.gmra.mrb[0].mxu0 %v733
      %v1227 = vpop.f32.mrb[0].mxu0
      %v1228 = vadd.f32 0.0, %v1227
      %v1229 = vpop.f32.mrb[0].mxu0
      %v1230 = vpop.f32.mrb[0].mxu0
      %v1231 = vadd.f32 0.0, %v1230
      %v1232 = vpop.f32.mrb[0].mxu0
      %1233 = vmatprep.mubr.bf16.mxu0 0
      %1234 = vmatmul.mubr.bf16.gmra.mrb[0].mxu0 %v735
      %v1235 = vpop.f32.mrb[0].mxu0
      %v1236 = vadd.f32 0.0, %v1235
      %v1237 = vpop.f32.mrb[0].mxu0
      %v1238 = vpop.f32.mrb[0].mxu0
      %v1239 = vadd.f32 0.0, %v1238
      %v1240 = vpop.f32.mrb[0].mxu0
      %1241 = vmatprep.mubr.bf16.mxu0 0
      %1242 = vmatmul.mubr.bf16.gmra.mrb[0].mxu0 %v737
      %v1243 = vpop.f32.mrb[0].mxu0
      %v1244 = vadd.f32 0.0, %v1243
      %v1245 = vpop.f32.mrb[0].mxu0
      %v1246 = vpop.f32.mrb[0].mxu0
      %v1247 = vadd.f32 0.0, %v1246
      %v1248 = vpop.f32.mrb[0].mxu0
      %1249 = vmatprep.mubr.bf16.mxu0 0
      %1250 = vmatmul.mubr.bf16.gmra.mrb[0].mxu0 %v739
      %v1251 = vpop.f32.mrb[0].mxu0
      %v1252 = vadd.f32 0.0, %v1251
      %v1253 = vpop.f32.mrb[0].mxu0
      %v1254 = vpop.f32.mrb[0].mxu0
      %v1255 = vadd.f32 0.0, %v1254
      %v1256 = vpop.f32.mrb[0].mxu0
      %1257 = vmatprep.mubr.bf16.mxu0 0
      %1258 = vmatmul.mubr.bf16.gmra.mrb[0].mxu0 %v741
      %v1259 = vpop.f32.mrb[0].mxu0
      %v1260 = vadd.f32 0.0, %v1259
      %v1261 = vpop.f32.mrb[0].mxu0
      %v1262 = vpop.f32.mrb[0].mxu0
      %v1263 = vadd.f32 0.0, %v1262
      %v1264 = vpop.f32.mrb[0].mxu0
      %1265 = vmatprep.mubr.bf16.mxu0 0
      %1266 = vmatmul.mubr.bf16.gmra.mrb[0].mxu0 %v743
      %v1267 = vpop.f32.mrb[0].mxu0
      %v1268 = vadd.f32 0.0, %v1267
      %v1269 = vpop.f32.mrb[0].mxu0
      %v1270 = vpop.f32.mrb[0].mxu0
      %v1271 = vadd.f32 0.0, %v1270
      %v1272 = vpop.f32.mrb[0].mxu0
      %1273 = vmatprep.mubr.bf16.mxu0 0
      %1274 = vmatmul.mubr.bf16.gmra.mrb[0].mxu0 %v745
      %v1275 = vpop.f32.mrb[0].mxu0
      %v1276 = vadd.f32 0.0, %v1275
      %v1277 = vpop.f32.mrb[0].mxu0
      %v1278 = vpop.f32.mrb[0].mxu0
      %v1279 = vadd.f32 0.0, %v1278
      %v1280 = vpop.f32.mrb[0].mxu0
      %1281 = vmatprep.mubr.bf16.mxu0 0
      %1282 = vmatmul.mubr.bf16.gmra.mrb[0].mxu0 %v747
      %v1283 = vpop.f32.mrb[0].mxu0
      %v1284 = vadd.f32 0.0, %v1283
      %v1285 = vpop.f32.mrb[0].mxu0
      %v1286 = vpop.f32.mrb[0].mxu0
      %v1287 = vadd.f32 0.0, %v1286
      %v1288 = vpop.f32.mrb[0].mxu0
      %1289 = vmatprep.mubr.bf16.mxu0 0
      %1290 = vmatmul.mubr.bf16.gmra.mrb[0].mxu0 %v749
      %v1291 = vpop.f32.mrb[0].mxu0
      %v1292 = vadd.f32 0.0, %v1291
      %v1293 = vpop.f32.mrb[0].mxu0
      %v1294 = vpop.f32.mrb[0].mxu0
      %v1295 = vadd.f32 0.0, %v1294
      %v1296 = vpop.f32.mrb[0].mxu0
      %1297 = vmatprep.mubr.bf16.mxu0 0
      %1298 = vmatmul.mubr.bf16.gmra.mrb[0].mxu0 %v751
      %v1299 = vpop.f32.mrb[0].mxu0
      %v1300 = vadd.f32 0.0, %v1299
      %v1301 = vpop.f32.mrb[0].mxu0
      %v1302 = vpop.f32.mrb[0].mxu0
      %v1303 = vadd.f32 0.0, %v1302
      %v1304 = vpop.f32.mrb[0].mxu0
      %1305 = vmatprep.mubr.bf16.mxu0 0
      %1306 = vmatmul.mubr.bf16.gmra.mrb[0].mxu0 %v955
      %v1307 = vpop.f32.mrb[0].mxu0
      %v1308 = vadd.f32 0.0, %v1307
      %v1309 = vpop.f32.mrb[0].mxu0
      %v1310 = vpop.f32.mrb[0].mxu0
      %v1311 = vadd.f32 0.0, %v1310
      %v1312 = vpop.f32.mrb[0].mxu0
      %1313 = vmatprep.mubr.bf16.mxu0 0
      %1314 = vmatmul.mubr.bf16.gmra.mrb[0].mxu0 %v751
      %v1315 = vpop.f32.mrb[0].mxu0
      %v1316 = vadd.f32 0.0, %v1315
      %v1317 = vpop.f32.mrb[0].mxu0
      %v1318 = vpop.f32.mrb[0].mxu0
      %v1319 = vadd.f32 0.0, %v1318
      %v1320 = vpop.f32.mrb[0].mxu0
      %1321 = vdwg.mxu0
      %v1322 = vadd.f32 %v1121, %v1196
      %v1323 = vadd.f32 %v1122, %v1199
      %v1324 = vadd.f32 %v1123, %v1204
      %v1325 = vadd.f32 %v1124, %v1207
      %v1326 = vadd.f32 %v1125, %v1212
      %v1327 = vadd.f32 %v1126, %v1215
      %v1328 = vadd.f32 %v1127, %v1220
      %v1329 = vadd.f32 %v1128, %v1223
      %v1330 = vadd.f32 %v1129, %v1228
      %v1331 = vadd.f32 %v1130, %v1231
      %v1332 = vadd.f32 %v1131, %v1236
      %v1333 = vadd.f32 %v1132, %v1239
      %v1334 = vadd.f32 %v1133, %v1244
      %v1335 = vadd.f32 %v1134, %v1247
      %v1336 = vadd.f32 %v1135, %v1252
      %v1337 = vadd.f32 %v1136, %v1255
      %v1338 = vadd.f32 %v1137, %v1260
      %v1339 = vadd.f32 %v1138, %v1263
      %v1340 = vadd.f32 %v1139, %v1268
      %v1341 = vadd.f32 %v1140, %v1271
      %v1342 = vadd.f32 %v1141, %v1276
      %v1343 = vadd.f32 %v1142, %v1279
      %v1344 = vadd.f32 %v1143, %v1284
      %v1345 = vadd.f32 %v1144, %v1287
      %v1346 = vadd.f32 %v1145, %v1292
      %v1347 = vadd.f32 %v1146, %v1295
      %v1348 = vadd.f32 %v1147, %v1300
      %v1349 = vadd.f32 %v1148, %v1303
      %v1350 = vadd.f32 %v1149, %v1308
      %v1351 = vadd.f32 %v1150, %v1311
      %v1352 = vadd.f32 %v1151, %v1316
      %v1353 = vadd.f32 %v1152, %v1319
      %v1354 = vsel %vm629, %v1322, 0.0
      %v1355 = vsel %vm629, %v1323, 0.0
      %v1356 = vadd.f32 %v1354, %v1355
      %v1357 = vsel %vm629, %v1324, 0.0
      %v1358 = vadd.f32 %v1356, %v1357
      %v1359 = vsel %vm629, %v1325, 0.0
      %v1360 = vadd.f32 %v1358, %v1359
      %v1361 = vsel %vm629, %v1326, 0.0
      %v1362 = vadd.f32 %v1360, %v1361
      %v1363 = vsel %vm629, %v1327, 0.0
      %v1364 = vadd.f32 %v1362, %v1363
      %v1365 = vsel %vm629, %v1328, 0.0
      %v1366 = vadd.f32 %v1364, %v1365
      %v1367 = vsel %vm629, %v1329, 0.0
      %v1368 = vadd.f32 %v1366, %v1367
      %v1369 = vsel %vm629, %v1330, 0.0
      %v1370 = vadd.f32 %v1368, %v1369
      %v1371 = vsel %vm629, %v1331, 0.0
      %v1372 = vadd.f32 %v1370, %v1371
      %v1373 = vsel %vm629, %v1332, 0.0
      %v1374 = vadd.f32 %v1372, %v1373
      %v1375 = vsel %vm629, %v1333, 0.0
      %v1376 = vadd.f32 %v1374, %v1375
      %v1377 = vsel %vm629, %v1334, 0.0
      %v1378 = vadd.f32 %v1376, %v1377
      %v1379 = vsel %vm629, %v1335, 0.0
      %v1380 = vadd.f32 %v1378, %v1379
      %v1381 = vsel %vm629, %v1336, 0.0
      %v1382 = vadd.f32 %v1380, %v1381
      %v1383 = vsel %vm629, %v1337, 0.0
      %v1384 = vadd.f32 %v1382, %v1383
      %v1385 = vsel %vm629, %v1338, 0.0
      %v1386 = vadd.f32 %v1384, %v1385
      %v1387 = vsel %vm629, %v1339, 0.0
      %v1388 = vadd.f32 %v1386, %v1387
      %v1389 = vsel %vm629, %v1340, 0.0
      %v1390 = vadd.f32 %v1388, %v1389
      %v1391 = vsel %vm629, %v1341, 0.0
      %v1392 = vadd.f32 %v1390, %v1391
      %v1393 = vsel %vm629, %v1342, 0.0
      %v1394 = vadd.f32 %v1392, %v1393
      %v1395 = vsel %vm629, %v1343, 0.0
      %v1396 = vadd.f32 %v1394, %v1395
      %v1397 = vsel %vm629, %v1344, 0.0
      %v1398 = vadd.f32 %v1396, %v1397
      %v1399 = vsel %vm629, %v1345, 0.0
      %v1400 = vadd.f32 %v1398, %v1399
      %v1401 = vsel %vm629, %v1346, 0.0
      %v1402 = vadd.f32 %v1400, %v1401
      %v1403 = vsel %vm629, %v1347, 0.0
      %v1404 = vadd.f32 %v1402, %v1403
      %v1405 = vsel %vm629, %v1348, 0.0
      %v1406 = vadd.f32 %v1404, %v1405
      %v1407 = vsel %vm629, %v1349, 0.0
      %v1408 = vadd.f32 %v1406, %v1407
      %v1409 = vsel %vm629, %v1350, 0.0
      %v1410 = vadd.f32 %v1408, %v1409
      %v1411 = vsel %vm629, %v1351, 0.0
      %v1412 = vadd.f32 %v1410, %v1411
      %v1413 = vsel %vm629, %v1352, 0.0
      %v1414 = vadd.f32 %v1412, %v1413
      %v1415 = vsel %vm629, %v1353, 0.0
      %v1416 = vadd.f32 %v1414, %v1415
      %v1417 = vrot.slane %v1416, 4
      %v1418 = vadd.f32 %v1416, %v1417
      %v1419 = vrot.slane %v1418, 2
      %v1420 = vadd.f32 %v1418, %v1419
      %v1421 = vrot.slane %v1420, 1
      %v1422 = vadd.f32 %v1420, %v1421
      %v1423 = vrcp.pop 256.0
      %v1424 = vmul.f32 %v1422, %v1423
      %v1425 = vsub.f32 %v1322, %v1424
      %v1426 = vsub.f32 %v1323, %v1424
      %v1427 = vsub.f32 %v1324, %v1424
      %v1428 = vsub.f32 %v1325, %v1424
      %v1429 = vsub.f32 %v1326, %v1424
      %v1430 = vsub.f32 %v1327, %v1424
      %v1431 = vsub.f32 %v1328, %v1424
      %v1432 = vsub.f32 %v1329, %v1424
      %v1433 = vsub.f32 %v1330, %v1424
      %v1434 = vsub.f32 %v1331, %v1424
      %v1435 = vsub.f32 %v1332, %v1424
      %v1436 = vsub.f32 %v1333, %v1424
      %v1437 = vsub.f32 %v1334, %v1424
      %v1438 = vsub.f32 %v1335, %v1424
      %v1439 = vsub.f32 %v1336, %v1424
      %v1440 = vsub.f32 %v1337, %v1424
      %v1441 = vsub.f32 %v1338, %v1424
      %v1442 = vsub.f32 %v1339, %v1424
      %v1443 = vsub.f32 %v1340, %v1424
      %v1444 = vsub.f32 %v1341, %v1424
      %v1445 = vsub.f32 %v1342, %v1424
      %v1446 = vsub.f32 %v1343, %v1424
      %v1447 = vsub.f32 %v1344, %v1424
      %v1448 = vsub.f32 %v1345, %v1424
      %v1449 = vsub.f32 %v1346, %v1424
      %v1450 = vsub.f32 %v1347, %v1424
      %v1451 = vsub.f32 %v1348, %v1424
      %v1452 = vsub.f32 %v1349, %v1424
      %v1453 = vsub.f32 %v1350, %v1424
      %v1454 = vsub.f32 %v1351, %v1424
      %v1455 = vsub.f32 %v1352, %v1424
      %v1456 = vsub.f32 %v1353, %v1424
      %v1457 = vmul.f32 %v1425, %v1425
      %v1458 = vmul.f32 %v1426, %v1426
      %v1459 = vmul.f32 %v1427, %v1427
      %v1460 = vmul.f32 %v1428, %v1428
      %v1461 = vmul.f32 %v1429, %v1429
      %v1462 = vmul.f32 %v1430, %v1430
      %v1463 = vmul.f32 %v1431, %v1431
      %v1464 = vmul.f32 %v1432, %v1432
      %v1465 = vmul.f32 %v1433, %v1433
      %v1466 = vmul.f32 %v1434, %v1434
      %v1467 = vmul.f32 %v1435, %v1435
      %v1468 = vmul.f32 %v1436, %v1436
      %v1469 = vmul.f32 %v1437, %v1437
      %v1470 = vmul.f32 %v1438, %v1438
      %v1471 = vmul.f32 %v1439, %v1439
      %v1472 = vmul.f32 %v1440, %v1440
      %v1473 = vmul.f32 %v1441, %v1441
      %v1474 = vmul.f32 %v1442, %v1442
      %v1475 = vmul.f32 %v1443, %v1443
      %v1476 = vmul.f32 %v1444, %v1444
      %v1477 = vmul.f32 %v1445, %v1445
      %v1478 = vmul.f32 %v1446, %v1446
      %v1479 = vmul.f32 %v1447, %v1447
      %v1480 = vmul.f32 %v1448, %v1448
      %v1481 = vmul.f32 %v1449, %v1449
      %v1482 = vmul.f32 %v1450, %v1450
      %v1483 = vmul.f32 %v1451, %v1451
      %v1484 = vmul.f32 %v1452, %v1452
      %v1485 = vmul.f32 %v1453, %v1453
      %v1486 = vmul.f32 %v1454, %v1454
      %v1487 = vmul.f32 %v1455, %v1455
      %v1488 = vmul.f32 %v1456, %v1456
      %v1489 = vsel %vm629, %v1457, 0.0
      %v1490 = vsel %vm629, %v1458, 0.0
      %v1491 = vadd.f32 %v1489, %v1490
      %v1492 = vsel %vm629, %v1459, 0.0
      %v1493 = vadd.f32 %v1491, %v1492
      %v1494 = vsel %vm629, %v1460, 0.0
      %v1495 = vadd.f32 %v1493, %v1494
      %v1496 = vsel %vm629, %v1461, 0.0
      %v1497 = vadd.f32 %v1495, %v1496
      %v1498 = vsel %vm629, %v1462, 0.0
      %v1499 = vadd.f32 %v1497, %v1498
      %v1500 = vsel %vm629, %v1463, 0.0
      %v1501 = vadd.f32 %v1499, %v1500
      %v1502 = vsel %vm629, %v1464, 0.0
      %v1503 = vadd.f32 %v1501, %v1502
      %v1504 = vsel %vm629, %v1465, 0.0
      %v1505 = vadd.f32 %v1503, %v1504
      %v1506 = vsel %vm629, %v1466, 0.0
      %v1507 = vadd.f32 %v1505, %v1506
      %v1508 = vsel %vm629, %v1467, 0.0
      %v1509 = vadd.f32 %v1507, %v1508
      %v1510 = vsel %vm629, %v1468, 0.0
      %v1511 = vadd.f32 %v1509, %v1510
      %v1512 = vsel %vm629, %v1469, 0.0
      %v1513 = vadd.f32 %v1511, %v1512
      %v1514 = vsel %vm629, %v1470, 0.0
      %v1515 = vadd.f32 %v1513, %v1514
      %v1516 = vsel %vm629, %v1471, 0.0
      %v1517 = vadd.f32 %v1515, %v1516
      %v1518 = vsel %vm629, %v1472, 0.0
      %v1519 = vadd.f32 %v1517, %v1518
      %v1520 = vsel %vm629, %v1473, 0.0
      %v1521 = vadd.f32 %v1519, %v1520
      %v1522 = vsel %vm629, %v1474, 0.0
      %v1523 = vadd.f32 %v1521, %v1522
      %v1524 = vsel %vm629, %v1475, 0.0
      %v1525 = vadd.f32 %v1523, %v1524
      %v1526 = vsel %vm629, %v1476, 0.0
      %v1527 = vadd.f32 %v1525, %v1526
      %v1528 = vsel %vm629, %v1477, 0.0
      %v1529 = vadd.f32 %v1527, %v1528
      %v1530 = vsel %vm629, %v1478, 0.0
      %v1531 = vadd.f32 %v1529, %v1530
      %v1532 = vsel %vm629, %v1479, 0.0
      %v1533 = vadd.f32 %v1531, %v1532
      %v1534 = vsel %vm629, %v1480, 0.0
      %v1535 = vadd.f32 %v1533, %v1534
      %v1536 = vsel %vm629, %v1481, 0.0
      %v1537 = vadd.f32 %v1535, %v1536
      %v1538 = vsel %vm629, %v1482, 0.0
      %v1539 = vadd.f32 %v1537, %v1538
      %v1540 = vsel %vm629, %v1483, 0.0
      %v1541 = vadd.f32 %v1539, %v1540
      %v1542 = vsel %vm629, %v1484, 0.0
      %v1543 = vadd.f32 %v1541, %v1542
      %v1544 = vsel %vm629, %v1485, 0.0
      %v1545 = vadd.f32 %v1543, %v1544
      %v1546 = vsel %vm629, %v1486, 0.0
      %v1547 = vadd.f32 %v1545, %v1546
      %v1548 = vsel %vm629, %v1487, 0.0
      %v1549 = vadd.f32 %v1547, %v1548
      %v1550 = vsel %vm629, %v1488, 0.0
      %v1551 = vadd.f32 %v1549, %v1550
      %v1552 = vrot.slane %v1551, 4
      %v1553 = vadd.f32 %v1551, %v1552
      %v1554 = vrot.slane %v1553, 2
      %v1555 = vadd.f32 %v1553, %v1554
      %v1556 = vrot.slane %v1555, 1
      %v1557 = vadd.f32 %v1555, %v1556
      %v1558 = vmul.f32 %v1557, %v1423
      %v1559 = vadd.f32 %v1558, 1e-05
      %v1560 = vrsqrt.pop %v1559
      %v1561 = vmul.f32 %v1425, %v1560
      %v1562 = vmul.f32 %v1426, %v1560
      %v1563 = vmul.f32 %v1427, %v1560
      %v1564 = vmul.f32 %v1428, %v1560
      %v1565 = vmul.f32 %v1429, %v1560
      %v1566 = vmul.f32 %v1430, %v1560
      %v1567 = vmul.f32 %v1431, %v1560
      %v1568 = vmul.f32 %v1432, %v1560
      %v1569 = vmul.f32 %v1433, %v1560
      %v1570 = vmul.f32 %v1434, %v1560
      %v1571 = vmul.f32 %v1435, %v1560
      %v1572 = vmul.f32 %v1436, %v1560
      %v1573 = vmul.f32 %v1437, %v1560
      %v1574 = vmul.f32 %v1438, %v1560
      %v1575 = vmul.f32 %v1439, %v1560
      %v1576 = vmul.f32 %v1440, %v1560
      %v1577 = vmul.f32 %v1441, %v1560
      %v1578 = vmul.f32 %v1442, %v1560
      %v1579 = vmul.f32 %v1443, %v1560
      %v1580 = vmul.f32 %v1444, %v1560
      %v1581 = vmul.f32 %v1445, %v1560
      %v1582 = vmul.f32 %v1446, %v1560
      %v1583 = vmul.f32 %v1447, %v1560
      %v1584 = vmul.f32 %v1448, %v1560
      %v1585 = vmul.f32 %v1449, %v1560
      %v1586 = vmul.f32 %v1450, %v1560
      %v1587 = vmul.f32 %v1451, %v1560
      %v1588 = vmul.f32 %v1452, %v1560
      %v1589 = vmul.f32 %v1453, %v1560
      %v1590 = vmul.f32 %v1454, %v1560
      %v1591 = vmul.f32 %v1455, %v1560
      %v1592 = vmul.f32 %v1456, %v1560
      %v1593 = vmax.f32 %v1561, 0.0
      %v1594 = vmax.f32 %v1562, 0.0
      %v1595 = vmax.f32 %v1563, 0.0
      %v1596 = vmax.f32 %v1564, 0.0
      %v1597 = vmax.f32 %v1565, 0.0
      %v1598 = vmax.f32 %v1566, 0.0
      %v1599 = vmax.f32 %v1567, 0.0
      %v1600 = vmax.f32 %v1568, 0.0
      %v1601 = vmax.f32 %v1569, 0.0
      %v1602 = vmax.f32 %v1570, 0.0
      %v1603 = vmax.f32 %v1571, 0.0
      %v1604 = vmax.f32 %v1572, 0.0
      %v1605 = vmax.f32 %v1573, 0.0
      %v1606 = vmax.f32 %v1574, 0.0
      %v1607 = vmax.f32 %v1575, 0.0
      %v1608 = vmax.f32 %v1576, 0.0
      %v1609 = vmax.f32 %v1577, 0.0
      %v1610 = vmax.f32 %v1578, 0.0
      %v1611 = vmax.f32 %v1579, 0.0
      %v1612 = vmax.f32 %v1580, 0.0
      %v1613 = vmax.f32 %v1581, 0.0
      %v1614 = vmax.f32 %v1582, 0.0
      %v1615 = vmax.f32 %v1583, 0.0
      %v1616 = vmax.f32 %v1584, 0.0
      %v1617 = vmax.f32 %v1585, 0.0
      %v1618 = vmax.f32 %v1586, 0.0
      %v1619 = vmax.f32 %v1587, 0.0
      %v1620 = vmax.f32 %v1588, 0.0
      %v1621 = vmax.f32 %v1589, 0.0
      %v1622 = vmax.f32 %v1590, 0.0
      %v1623 = vmax.f32 %v1591, 0.0
      %v1624 = vmax.f32 %v1592, 0.0
      %v1625 = vld [vmem:[%s4] sm:$0x1]
      %v1626 = vpack.c.bf16 %v1594, %v1593
      %v1627 = vpack.c.bf16 %v1596, %v1595
      %v1628 = vpack.c.bf16 %v1598, %v1597
      %v1629 = vpack.c.bf16 %v1600, %v1599
      %v1630 = vpack.c.bf16 %v1602, %v1601
      %v1631 = vpack.c.bf16 %v1604, %v1603
      %v1632 = vpack.c.bf16 %v1606, %v1605
      %v1633 = vpack.c.bf16 %v1608, %v1607
      %v1634 = vpack.c.bf16 %v1610, %v1609
      %v1635 = vpack.c.bf16 %v1612, %v1611
      %v1636 = vpack.c.bf16 %v1614, %v1613
      %v1637 = vpack.c.bf16 %v1616, %v1615
      %v1638 = vpack.c.bf16 %v1618, %v1617
      %v1639 = vpack.c.bf16 %v1620, %v1619
      %v1640 = vpack.c.bf16 %v1622, %v1621
      %v1641 = vpack.c.bf16 %v1624, %v1623
      %v1643 = vshrl.u32 %v1626, 16
      %v1646 = vshrl.u32 %v1627, 16
      %v1649 = vshrl.u32 %v1628, 16
      %v1652 = vshrl.u32 %v1629, 16
      %v1655 = vshrl.u32 %v1630, 16
      %v1658 = vshrl.u32 %v1631, 16
      %v1661 = vshrl.u32 %v1632, 16
      %v1664 = vshrl.u32 %v1633, 16
      %v1667 = vshrl.u32 %v1634, 16
      %v1670 = vshrl.u32 %v1635, 16
      %v1673 = vshrl.u32 %v1636, 16
      %v1676 = vshrl.u32 %v1637, 16
      %v1679 = vshrl.u32 %v1638, 16
      %v1682 = vshrl.u32 %v1639, 16
      %v1685 = vshrl.u32 %v1640, 16
      %v1688 = vshrl.u32 %v1641, 16
      %v1706 = vrot.slane %v1643, 7
      %v1707 = vshll.u32 %v1626, 16
      %v1709 = vor.u32 %v1706, %v1707
      %v1710 = vrot.slane %v1646, 7
      %v1711 = vshll.u32 %v1627, 16
      %v1713 = vor.u32 %v1710, %v1711
      %v1714 = vrot.slane %v1649, 7
      %v1715 = vshll.u32 %v1628, 16
      %v1717 = vor.u32 %v1714, %v1715
      %v1718 = vrot.slane %v1652, 7
      %v1719 = vshll.u32 %v1629, 16
      %v1721 = vor.u32 %v1718, %v1719
      %v1722 = vrot.slane %v1655, 7
      %v1723 = vshll.u32 %v1630, 16
      %v1725 = vor.u32 %v1722, %v1723
      %v1726 = vrot.slane %v1658, 7
      %v1727 = vshll.u32 %v1631, 16
      %v1729 = vor.u32 %v1726, %v1727
      %v1730 = vrot.slane %v1661, 7
      %v1731 = vshll.u32 %v1632, 16
      %v1733 = vor.u32 %v1730, %v1731
      %v1734 = vrot.slane %v1664, 7
      %v1735 = vshll.u32 %v1633, 16
      %v1737 = vor.u32 %v1734, %v1735
      %v1738 = vrot.slane %v1667, 7
      %v1739 = vshll.u32 %v1634, 16
      %v1741 = vor.u32 %v1738, %v1739
      %v1742 = vrot.slane %v1670, 7
      %v1743 = vshll.u32 %v1635, 16
      %v1745 = vor.u32 %v1742, %v1743
      %v1746 = vrot.slane %v1673, 7
      %v1747 = vshll.u32 %v1636, 16
      %v1749 = vor.u32 %v1746, %v1747
      %v1750 = vrot.slane %v1676, 7
      %v1751 = vshll.u32 %v1637, 16
      %v1753 = vor.u32 %v1750, %v1751
      %v1754 = vrot.slane %v1679, 7
      %v1755 = vshll.u32 %v1638, 16
      %v1757 = vor.u32 %v1754, %v1755
      %v1758 = vrot.slane %v1682, 7
      %v1759 = vshll.u32 %v1639, 16
      %v1761 = vor.u32 %v1758, %v1759
      %v1762 = vrot.slane %v1685, 7
      %v1763 = vshll.u32 %v1640, 16
      %v1765 = vor.u32 %v1762, %v1763
      %v1766 = vrot.slane %v1688, 7
      %v1767 = vshll.u32 %v1641, 16
      %v1769 = vor.u32 %v1766, %v1767
      %v1786 = vsel %vm433, %v1643, %v1709
      %v1787 = vsel %vm433, %v1646, %v1713
      %v1788 = vsel %vm433, %v1649, %v1717
      %v1789 = vsel %vm433, %v1652, %v1721
      %v1790 = vsel %vm433, %v1655, %v1725
      %v1791 = vsel %vm433, %v1658, %v1729
      %v1792 = vsel %vm433, %v1661, %v1733
      %v1793 = vsel %vm433, %v1664, %v1737
      %v1794 = vsel %vm433, %v1667, %v1741
      %v1795 = vsel %vm433, %v1670, %v1745
      %v1796 = vsel %vm433, %v1673, %v1749
      %v1797 = vsel %vm433, %v1676, %v1753
      %v1798 = vsel %vm433, %v1679, %v1757
      %v1799 = vsel %vm433, %v1682, %v1761
      %v1800 = vsel %vm433, %v1685, %v1765
      %v1801 = vsel %vm433, %v1688, %v1769
      %v1802 = vrot.slane %v1707, 1
      %v1803 = vor.u32 %v1643, %v1802
      %v1804 = vrot.slane %v1711, 1
      %v1805 = vor.u32 %v1646, %v1804
      %v1806 = vrot.slane %v1715, 1
      %v1807 = vor.u32 %v1649, %v1806
      %v1808 = vrot.slane %v1719, 1
      %v1809 = vor.u32 %v1652, %v1808
      %v1810 = vrot.slane %v1723, 1
      %v1811 = vor.u32 %v1655, %v1810
      %v1812 = vrot.slane %v1727, 1
      %v1813 = vor.u32 %v1658, %v1812
      %v1814 = vrot.slane %v1731, 1
      %v1815 = vor.u32 %v1661, %v1814
      %v1816 = vrot.slane %v1735, 1
      %v1817 = vor.u32 %v1664, %v1816
      %v1818 = vrot.slane %v1739, 1
      %v1819 = vor.u32 %v1667, %v1818
      %v1820 = vrot.slane %v1743, 1
      %v1821 = vor.u32 %v1670, %v1820
      %v1822 = vrot.slane %v1747, 1
      %v1823 = vor.u32 %v1673, %v1822
      %v1824 = vrot.slane %v1751, 1
      %v1825 = vor.u32 %v1676, %v1824
      %v1826 = vrot.slane %v1755, 1
      %v1827 = vor.u32 %v1679, %v1826
      %v1828 = vrot.slane %v1759, 1
      %v1829 = vor.u32 %v1682, %v1828
      %v1830 = vrot.slane %v1763, 1
      %v1831 = vor.u32 %v1685, %v1830
      %v1832 = vrot.slane %v1767, 1
      %v1833 = vor.u32 %v1688, %v1832
      %v1866 = vsel %vm516, %v1803, %v1707
      %v1867 = vsel %vm516, %v1805, %v1711
      %v1868 = vsel %vm516, %v1807, %v1715
      %v1869 = vsel %vm516, %v1809, %v1719
      %v1870 = vsel %vm516, %v1811, %v1723
      %v1871 = vsel %vm516, %v1813, %v1727
      %v1872 = vsel %vm516, %v1815, %v1731
      %v1873 = vsel %vm516, %v1817, %v1735
      %v1874 = vsel %vm516, %v1819, %v1739
      %v1875 = vsel %vm516, %v1821, %v1743
      %v1876 = vsel %vm516, %v1823, %v1747
      %v1877 = vsel %vm516, %v1825, %v1751
      %v1878 = vsel %vm516, %v1827, %v1755
      %v1879 = vsel %vm516, %v1829, %v1759
      %v1880 = vsel %vm516, %v1831, %v1763
      %v1881 = vsel %vm516, %v1833, %v1767
      %1898 = vrot.lane.b32.xlu0 %v1626, 4
      %v1899 = vpop.permute.xlu0 %1898
      %1900 = vrot.lane.b32.xlu0 %v1627, 4
      %v1901 = vpop.permute.xlu0 %1900
      %1902 = vrot.lane.b32.xlu0 %v1628, 4
      %v1903 = vpop.permute.xlu0 %1902
      %1904 = vrot.lane.b32.xlu0 %v1629, 4
      %v1905 = vpop.permute.xlu0 %1904
      %1906 = vrot.lane.b32.xlu0 %v1630, 4
      %v1907 = vpop.permute.xlu0 %1906
      %1908 = vrot.lane.b32.xlu0 %v1631, 4
      %v1909 = vpop.permute.xlu0 %1908
      %1910 = vrot.lane.b32.xlu0 %v1632, 4
      %v1911 = vpop.permute.xlu0 %1910
      %1912 = vrot.lane.b32.xlu0 %v1633, 4
      %v1913 = vpop.permute.xlu0 %1912
      %1914 = vrot.lane.b32.xlu0 %v1634, 4
      %v1915 = vpop.permute.xlu0 %1914
      %1916 = vrot.lane.b32.xlu0 %v1635, 4
      %v1917 = vpop.permute.xlu0 %1916
      %1918 = vrot.lane.b32.xlu0 %v1636, 4
      %v1919 = vpop.permute.xlu0 %1918
      %1920 = vrot.lane.b32.xlu0 %v1637, 4
      %v1921 = vpop.permute.xlu0 %1920
      %1922 = vrot.lane.b32.xlu0 %v1638, 4
      %v1923 = vpop.permute.xlu0 %1922
      %1924 = vrot.lane.b32.xlu0 %v1639, 4
      %v1925 = vpop.permute.xlu0 %1924
      %1926 = vrot.lane.b32.xlu0 %v1640, 4
      %v1927 = vpop.permute.xlu0 %1926
      %1928 = vrot.lane.b32.xlu0 %v1641, 4
      %v1929 = vpop.permute.xlu0 %1928
      %1946 = vrot.lane.b32.xlu0 %v1866, 8
      %v1947 = vpop.permute.xlu0 %1946
      %1948 = vrot.lane.b32.xlu0 %v1867, 8
      %v1949 = vpop.permute.xlu0 %1948
      %1950 = vrot.lane.b32.xlu0 %v1868, 8
      %v1951 = vpop.permute.xlu0 %1950
      %1952 = vrot.lane.b32.xlu0 %v1869, 8
      %v1953 = vpop.permute.xlu0 %1952
      %1954 = vrot.lane.b32.xlu0 %v1870, 8
      %v1955 = vpop.permute.xlu0 %1954
      %1956 = vrot.lane.b32.xlu0 %v1871, 8
      %v1957 = vpop.permute.xlu0 %1956
      %1958 = vrot.lane.b32.xlu0 %v1872, 8
      %v1959 = vpop.permute.xlu0 %1958
      %1960 = vrot.lane.b32.xlu0 %v1873, 8
      %v1961 = vpop.permute.xlu0 %1960
      %1962 = vrot.lane.b32.xlu0 %v1874, 8
      %v1963 = vpop.permute.xlu0 %1962
      %1964 = vrot.lane.b32.xlu0 %v1875, 8
      %v1965 = vpop.permute.xlu0 %1964
      %1966 = vrot.lane.b32.xlu0 %v1876, 8
      %v1967 = vpop.permute.xlu0 %1966
      %1968 = vrot.lane.b32.xlu0 %v1877, 8
      %v1969 = vpop.permute.xlu0 %1968
      %1970 = vrot.lane.b32.xlu0 %v1878, 8
      %v1971 = vpop.permute.xlu0 %1970
      %1972 = vrot.lane.b32.xlu0 %v1879, 8
      %v1973 = vpop.permute.xlu0 %1972
      %1974 = vrot.lane.b32.xlu0 %v1880, 8
      %v1975 = vpop.permute.xlu0 %1974
      %1976 = vrot.lane.b32.xlu0 %v1881, 8
      %v1977 = vpop.permute.xlu0 %1976
      %v1980 = vsel %vm629, %v1786, %v1899
      %v1983 = vsel %vm629, %v1787, %v1901
      %v1986 = vsel %vm629, %v1788, %v1903
      %v1989 = vsel %vm629, %v1789, %v1905
      %v1992 = vsel %vm629, %v1790, %v1907
      %v1995 = vsel %vm629, %v1791, %v1909
      %v1998 = vsel %vm629, %v1792, %v1911
      %v2001 = vsel %vm629, %v1793, %v1913
      %v2004 = vsel %vm629, %v1794, %v1915
      %v2007 = vsel %vm629, %v1795, %v1917
      %v2010 = vsel %vm629, %v1796, %v1919
      %v2013 = vsel %vm629, %v1797, %v1921
      %v2016 = vsel %vm629, %v1798, %v1923
      %v2019 = vsel %vm629, %v1799, %v1925
      %v2022 = vsel %vm629, %v1800, %v1927
      %v2025 = vsel %vm629, %v1801, %v1929
      %v2027 = vsel %vm678, %v1980, %v1947
      %v2029 = vsel %vm678, %v1983, %v1949
      %v2031 = vsel %vm678, %v1986, %v1951
      %v2033 = vsel %vm678, %v1989, %v1953
      %v2035 = vsel %vm678, %v1992, %v1955
      %v2037 = vsel %vm678, %v1995, %v1957
      %v2039 = vsel %vm678, %v1998, %v1959
      %v2041 = vsel %vm678, %v2001, %v1961
      %v2043 = vsel %vm678, %v2004, %v1963
      %v2045 = vsel %vm678, %v2007, %v1965
      %v2047 = vsel %vm678, %v2010, %v1967
      %v2049 = vsel %vm678, %v2013, %v1969
      %v2051 = vsel %vm678, %v2016, %v1971
      %v2053 = vsel %vm678, %v2019, %v1973
      %v2055 = vsel %vm678, %v2022, %v1975
      %v2057 = vsel %vm678, %v2025, %v1977
      %v2059 = vlaneseq
      %v2060 = vshrl.u32 %v2059, 7
      %v2061 = vsub.s32 0, %v2060
      %v2062 = vrot.slane %v1625, %v2061
      %v2066 = vunpack.c.l.b16 %v264
      %v2067 = vunpack.c.l.b16 %v265
      %v2068 = vpack.c.b16 %v2067, %v2066
      %v2069 = vsel %vm722, %v2029, 0
      %v2071 = vsel %vm722, %v2027, 0
      %v2073 = vsel %vm722, %v2031, 0
      %v2075 = vsel %vm722, %v2033, 0
      %v2077 = vsel %vm722, %v2035, 0
      %v2079 = vsel %vm722, %v2037, 0
      %v2081 = vsel %vm722, %v2039, 0
      %v2083 = vsel %vm722, %v2041, 0
      %v2085 = vsel %vm722, %v2043, 0
      %v2087 = vsel %vm722, %v2045, 0
      %v2089 = vsel %vm722, %v2047, 0
      %v2091 = vsel %vm722, %v2049, 0
      %v2093 = vsel %vm722, %v2051, 0
      %v2095 = vsel %vm722, %v2053, 0
      %v2097 = vsel %vm722, %v2055, 0
      %v2100 = vsel %vm753, %v2068, 0
      %2102 = vmatprep.subr.bf16.mxu0 0
      %2103 = vmatpush1.bf16.msra.mxu0 %v2100
      %2104 = vmatprep.subr.bf16.mxu0 0
      %2105 = vmatpush1.bf16.msra.mxu0 0
      %2106 = vmatprep.subr.bf16.mxu0 0
      %2107 = vmatpush1.bf16.msra.mxu0 0
      %2108 = vmatprep.subr.bf16.mxu0 0
      %2109 = vmatpush1.bf16.msra.mxu0 0
      %2110 = vmatprep.subr.bf16.mxu0 0
      %2111 = vmatpush1.bf16.msra.mxu0 0
      %2112 = vmatprep.subr.bf16.mxu0 0
      %2113 = vmatpush1.bf16.msra.mxu0 0
      %2114 = vmatprep.subr.bf16.mxu0 0
      %2115 = vmatpush1.bf16.msra.mxu0 0
      %2116 = vmatprep.subr.bf16.mxu0 0
      %2117 = vmatpush1.bf16.msra.mxu0 0
      %2118 = vmatprep.subr.bf16.mxu0 0
      %2119 = vmatpush1.bf16.msra.mxu0 0
      %2120 = vmatprep.subr.bf16.mxu0 0
      %2121 = vmatpush1.bf16.msra.mxu0 0
      %2122 = vmatprep.subr.bf16.mxu0 0
      %2123 = vmatpush1.bf16.msra.mxu0 0
      %2124 = vmatprep.subr.bf16.mxu0 0
      %2125 = vmatpush1.bf16.msra.mxu0 0
      %2126 = vmatprep.subr.bf16.mxu0 0
      %2127 = vmatpush1.bf16.msra.mxu0 0
      %2128 = vmatprep.subr.bf16.mxu0 0
      %2129 = vmatpush1.bf16.msra.mxu0 0
      %2130 = vmatprep.subr.bf16.mxu0 0
      %2131 = vmatpush1.bf16.msra.mxu0 0
      %2132 = vmatprep.subr.bf16.mxu0 0
      %2133 = vmatpush1.bf16.msra.mxu0 0
      %2134 = vmatprep.mubr.bf16.mxu0 0
      %2135 = vmatmul.mubr.bf16.gmra.mrb[0].mxu0 %v2069
      %v2136 = vpop.f32.mrb[0].mxu0
      %v2137 = vadd.f32 0.0, %v2136
      %v2138 = vpop.f32.mrb[0].mxu0
      %v2139 = vpop.f32.mrb[0].mxu0
      %v2140 = vadd.f32 0.0, %v2139
      %v2141 = vpop.f32.mrb[0].mxu0
      %2142 = vmatprep.mubr.bf16.mxu0 0
      %2143 = vmatmul.mubr.bf16.gmra.mrb[0].mxu0 %v2071
      %v2144 = vpop.f32.mrb[0].mxu0
      %v2145 = vadd.f32 0.0, %v2144
      %v2146 = vpop.f32.mrb[0].mxu0
      %v2147 = vpop.f32.mrb[0].mxu0
      %v2148 = vadd.f32 0.0, %v2147
      %v2149 = vpop.f32.mrb[0].mxu0
      %2150 = vmatprep.mubr.bf16.mxu0 0
      %2151 = vmatmul.mubr.bf16.gmra.mrb[0].mxu0 %v2069
      %v2152 = vpop.f32.mrb[0].mxu0
      %v2153 = vadd.f32 0.0, %v2152
      %v2154 = vpop.f32.mrb[0].mxu0
      %v2155 = vpop.f32.mrb[0].mxu0
      %v2156 = vadd.f32 0.0, %v2155
      %v2157 = vpop.f32.mrb[0].mxu0
      %2158 = vmatprep.mubr.bf16.mxu0 0
      %2159 = vmatmul.mubr.bf16.gmra.mrb[0].mxu0 %v2073
      %v2160 = vpop.f32.mrb[0].mxu0
      %v2161 = vadd.f32 0.0, %v2160
      %v2162 = vpop.f32.mrb[0].mxu0
      %v2163 = vpop.f32.mrb[0].mxu0
      %v2164 = vadd.f32 0.0, %v2163
      %v2165 = vpop.f32.mrb[0].mxu0
      %2166 = vmatprep.mubr.bf16.mxu0 0
      %2167 = vmatmul.mubr.bf16.gmra.mrb[0].mxu0 %v2075
      %v2168 = vpop.f32.mrb[0].mxu0
      %v2169 = vadd.f32 0.0, %v2168
      %v2170 = vpop.f32.mrb[0].mxu0
      %v2171 = vpop.f32.mrb[0].mxu0
      %v2172 = vadd.f32 0.0, %v2171
      %v2173 = vpop.f32.mrb[0].mxu0
      %2174 = vmatprep.mubr.bf16.mxu0 0
      %2175 = vmatmul.mubr.bf16.gmra.mrb[0].mxu0 %v2077
      %v2176 = vpop.f32.mrb[0].mxu0
      %v2177 = vadd.f32 0.0, %v2176
      %v2178 = vpop.f32.mrb[0].mxu0
      %v2179 = vpop.f32.mrb[0].mxu0
      %v2180 = vadd.f32 0.0, %v2179
      %v2181 = vpop.f32.mrb[0].mxu0
      %2182 = vmatprep.mubr.bf16.mxu0 0
      %2183 = vmatmul.mubr.bf16.gmra.mrb[0].mxu0 %v2079
      %v2184 = vpop.f32.mrb[0].mxu0
      %v2185 = vadd.f32 0.0, %v2184
      %v2186 = vpop.f32.mrb[0].mxu0
      %v2187 = vpop.f32.mrb[0].mxu0
      %v2188 = vadd.f32 0.0, %v2187
      %v2189 = vpop.f32.mrb[0].mxu0
      %2190 = vmatprep.mubr.bf16.mxu0 0
      %2191 = vmatmul.mubr.bf16.gmra.mrb[0].mxu0 %v2081
      %v2192 = vpop.f32.mrb[0].mxu0
      %v2193 = vadd.f32 0.0, %v2192
      %v2194 = vpop.f32.mrb[0].mxu0
      %v2195 = vpop.f32.mrb[0].mxu0
      %v2196 = vadd.f32 0.0, %v2195
      %v2197 = vpop.f32.mrb[0].mxu0
      %2198 = vmatprep.mubr.bf16.mxu0 0
      %2199 = vmatmul.mubr.bf16.gmra.mrb[0].mxu0 %v2083
      %v2200 = vpop.f32.mrb[0].mxu0
      %v2201 = vadd.f32 0.0, %v2200
      %v2202 = vpop.f32.mrb[0].mxu0
      %v2203 = vpop.f32.mrb[0].mxu0
      %v2204 = vadd.f32 0.0, %v2203
      %v2205 = vpop.f32.mrb[0].mxu0
      %2206 = vmatprep.mubr.bf16.mxu0 0
      %2207 = vmatmul.mubr.bf16.gmra.mrb[0].mxu0 %v2085
      %v2208 = vpop.f32.mrb[0].mxu0
      %v2209 = vadd.f32 0.0, %v2208
      %v2210 = vpop.f32.mrb[0].mxu0
      %v2211 = vpop.f32.mrb[0].mxu0
      %v2212 = vadd.f32 0.0, %v2211
      %v2213 = vpop.f32.mrb[0].mxu0
      %2214 = vmatprep.mubr.bf16.mxu0 0
      %2215 = vmatmul.mubr.bf16.gmra.mrb[0].mxu0 %v2087
      %v2216 = vpop.f32.mrb[0].mxu0
      %v2217 = vadd.f32 0.0, %v2216
      %v2218 = vpop.f32.mrb[0].mxu0
      %v2219 = vpop.f32.mrb[0].mxu0
      %v2220 = vadd.f32 0.0, %v2219
      %v2221 = vpop.f32.mrb[0].mxu0
      %2222 = vmatprep.mubr.bf16.mxu0 0
      %2223 = vmatmul.mubr.bf16.gmra.mrb[0].mxu0 %v2089
      %v2224 = vpop.f32.mrb[0].mxu0
      %v2225 = vadd.f32 0.0, %v2224
      %v2226 = vpop.f32.mrb[0].mxu0
      %v2227 = vpop.f32.mrb[0].mxu0
      %v2228 = vadd.f32 0.0, %v2227
      %v2229 = vpop.f32.mrb[0].mxu0
      %2230 = vmatprep.mubr.bf16.mxu0 0
      %2231 = vmatmul.mubr.bf16.gmra.mrb[0].mxu0 %v2091
      %v2232 = vpop.f32.mrb[0].mxu0
      %v2233 = vadd.f32 0.0, %v2232
      %v2234 = vpop.f32.mrb[0].mxu0
      %v2235 = vpop.f32.mrb[0].mxu0
      %v2236 = vadd.f32 0.0, %v2235
      %v2237 = vpop.f32.mrb[0].mxu0
      %2238 = vmatprep.mubr.bf16.mxu0 0
      %2239 = vmatmul.mubr.bf16.gmra.mrb[0].mxu0 %v2093
      %v2240 = vpop.f32.mrb[0].mxu0
      %v2241 = vadd.f32 0.0, %v2240
      %v2242 = vpop.f32.mrb[0].mxu0
      %v2243 = vpop.f32.mrb[0].mxu0
      %v2244 = vadd.f32 0.0, %v2243
      %v2245 = vpop.f32.mrb[0].mxu0
      %2246 = vmatprep.mubr.bf16.mxu0 0
      %2247 = vmatmul.mubr.bf16.gmra.mrb[0].mxu0 %v2095
      %v2248 = vpop.f32.mrb[0].mxu0
      %v2249 = vadd.f32 0.0, %v2248
      %v2250 = vpop.f32.mrb[0].mxu0
      %v2251 = vpop.f32.mrb[0].mxu0
      %v2252 = vadd.f32 0.0, %v2251
      %v2253 = vpop.f32.mrb[0].mxu0
      %2254 = vmatprep.mubr.bf16.mxu0 0
      %2255 = vmatmul.mubr.bf16.gmra.mrb[0].mxu0 %v2097
      %v2256 = vpop.f32.mrb[0].mxu0
      %v2257 = vadd.f32 0.0, %v2256
      %v2258 = vpop.f32.mrb[0].mxu0
      %v2259 = vpop.f32.mrb[0].mxu0
      %v2260 = vadd.f32 0.0, %v2259
      %v2261 = vpop.f32.mrb[0].mxu0
      %2262 = vdwg.mxu0
      %v2263 = vadd.f32 %v2062, %v2137
      %v2264 = vadd.f32 %v2062, %v2140
      %v2265 = vadd.f32 %v2062, %v2145
      %v2266 = vadd.f32 %v2062, %v2148
      %v2267 = vadd.f32 %v2062, %v2153
      %v2268 = vadd.f32 %v2062, %v2156
      %v2269 = vadd.f32 %v2062, %v2161
      %v2270 = vadd.f32 %v2062, %v2164
      %v2271 = vadd.f32 %v2062, %v2169
      %v2272 = vadd.f32 %v2062, %v2172
      %v2273 = vadd.f32 %v2062, %v2177
      %v2274 = vadd.f32 %v2062, %v2180
      %v2275 = vadd.f32 %v2062, %v2185
      %v2276 = vadd.f32 %v2062, %v2188
      %v2277 = vadd.f32 %v2062, %v2193
      %v2278 = vadd.f32 %v2062, %v2196
      %v2279 = vadd.f32 %v2062, %v2201
      %v2280 = vadd.f32 %v2062, %v2204
      %v2281 = vadd.f32 %v2062, %v2209
      %v2282 = vadd.f32 %v2062, %v2212
      %v2283 = vadd.f32 %v2062, %v2217
      %v2284 = vadd.f32 %v2062, %v2220
      %v2285 = vadd.f32 %v2062, %v2225
      %v2286 = vadd.f32 %v2062, %v2228
      %v2287 = vadd.f32 %v2062, %v2233
      %v2288 = vadd.f32 %v2062, %v2236
      %v2289 = vadd.f32 %v2062, %v2241
      %v2290 = vadd.f32 %v2062, %v2244
      %v2291 = vadd.f32 %v2062, %v2249
      %v2292 = vadd.f32 %v2062, %v2252
      %v2293 = vadd.f32 %v2062, %v2257
      %v2294 = vadd.f32 %v2062, %v2260
      %v2297 = vunpack.c.l.b16 %v266
      %v2298 = vunpack.c.l.b16 %v267
      %v2299 = vpack.c.b16 %v2298, %v2297
      %v2300 = vsel %vm722, %v2057, 0
      %v2303 = vsel %vm753, %v2299, 0
      %2305 = vmatprep.subr.bf16.mxu0 0
      %2306 = vmatpush1.bf16.msra.mxu0 %v2303
      %2307 = vmatprep.subr.bf16.mxu0 0
      %2308 = vmatpush1.bf16.msra.mxu0 0
      %2309 = vmatprep.subr.bf16.mxu0 0
      %2310 = vmatpush1.bf16.msra.mxu0 0
      %2311 = vmatprep.subr.bf16.mxu0 0
      %2312 = vmatpush1.bf16.msra.mxu0 0
      %2313 = vmatprep.subr.bf16.mxu0 0
      %2314 = vmatpush1.bf16.msra.mxu0 0
      %2315 = vmatprep.subr.bf16.mxu0 0
      %2316 = vmatpush1.bf16.msra.mxu0 0
      %2317 = vmatprep.subr.bf16.mxu0 0
      %2318 = vmatpush1.bf16.msra.mxu0 0
      %2319 = vmatprep.subr.bf16.mxu0 0
      %2320 = vmatpush1.bf16.msra.mxu0 0
      %2321 = vmatprep.subr.bf16.mxu0 0
      %2322 = vmatpush1.bf16.msra.mxu0 0
      %2323 = vmatprep.subr.bf16.mxu0 0
      %2324 = vmatpush1.bf16.msra.mxu0 0
      %2325 = vmatprep.subr.bf16.mxu0 0
      %2326 = vmatpush1.bf16.msra.mxu0 0
      %2327 = vmatprep.subr.bf16.mxu0 0
      %2328 = vmatpush1.bf16.msra.mxu0 0
      %2329 = vmatprep.subr.bf16.mxu0 0
      %2330 = vmatpush1.bf16.msra.mxu0 0
      %2331 = vmatprep.subr.bf16.mxu0 0
      %2332 = vmatpush1.bf16.msra.mxu0 0
      %2333 = vmatprep.subr.bf16.mxu0 0
      %2334 = vmatpush1.bf16.msra.mxu0 0
      %2335 = vmatprep.subr.bf16.mxu0 0
      %2336 = vmatpush1.bf16.msra.mxu0 0
      %2337 = vmatprep.mubr.bf16.mxu0 0
      %2338 = vmatmul.mubr.bf16.gmra.mrb[0].mxu0 %v2071
      %v2339 = vpop.f32.mrb[0].mxu0
      %v2340 = vadd.f32 0.0, %v2339
      %v2341 = vpop.f32.mrb[0].mxu0
      %v2342 = vpop.f32.mrb[0].mxu0
      %v2343 = vadd.f32 0.0, %v2342
      %v2344 = vpop.f32.mrb[0].mxu0
      %2345 = vmatprep.mubr.bf16.mxu0 0
      %2346 = vmatmul.mubr.bf16.gmra.mrb[0].mxu0 %v2069
      %v2347 = vpop.f32.mrb[0].mxu0
      %v2348 = vadd.f32 0.0, %v2347
      %v2349 = vpop.f32.mrb[0].mxu0
      %v2350 = vpop.f32.mrb[0].mxu0
      %v2351 = vadd.f32 0.0, %v2350
      %v2352 = vpop.f32.mrb[0].mxu0
      %2353 = vmatprep.mubr.bf16.mxu0 0
      %2354 = vmatmul.mubr.bf16.gmra.mrb[0].mxu0 %v2073
      %v2355 = vpop.f32.mrb[0].mxu0
      %v2356 = vadd.f32 0.0, %v2355
      %v2357 = vpop.f32.mrb[0].mxu0
      %v2358 = vpop.f32.mrb[0].mxu0
      %v2359 = vadd.f32 0.0, %v2358
      %v2360 = vpop.f32.mrb[0].mxu0
      %2361 = vmatprep.mubr.bf16.mxu0 0
      %2362 = vmatmul.mubr.bf16.gmra.mrb[0].mxu0 %v2075
      %v2363 = vpop.f32.mrb[0].mxu0
      %v2364 = vadd.f32 0.0, %v2363
      %v2365 = vpop.f32.mrb[0].mxu0
      %v2366 = vpop.f32.mrb[0].mxu0
      %v2367 = vadd.f32 0.0, %v2366
      %v2368 = vpop.f32.mrb[0].mxu0
      %2369 = vmatprep.mubr.bf16.mxu0 0
      %2370 = vmatmul.mubr.bf16.gmra.mrb[0].mxu0 %v2077
      %v2371 = vpop.f32.mrb[0].mxu0
      %v2372 = vadd.f32 0.0, %v2371
      %v2373 = vpop.f32.mrb[0].mxu0
      %v2374 = vpop.f32.mrb[0].mxu0
      %v2375 = vadd.f32 0.0, %v2374
      %v2376 = vpop.f32.mrb[0].mxu0
      %2377 = vmatprep.mubr.bf16.mxu0 0
      %2378 = vmatmul.mubr.bf16.gmra.mrb[0].mxu0 %v2079
      %v2379 = vpop.f32.mrb[0].mxu0
      %v2380 = vadd.f32 0.0, %v2379
      %v2381 = vpop.f32.mrb[0].mxu0
      %v2382 = vpop.f32.mrb[0].mxu0
      %v2383 = vadd.f32 0.0, %v2382
      %v2384 = vpop.f32.mrb[0].mxu0
      %2385 = vmatprep.mubr.bf16.mxu0 0
      %2386 = vmatmul.mubr.bf16.gmra.mrb[0].mxu0 %v2081
      %v2387 = vpop.f32.mrb[0].mxu0
      %v2388 = vadd.f32 0.0, %v2387
      %v2389 = vpop.f32.mrb[0].mxu0
      %v2390 = vpop.f32.mrb[0].mxu0
      %v2391 = vadd.f32 0.0, %v2390
      %v2392 = vpop.f32.mrb[0].mxu0
      %2393 = vmatprep.mubr.bf16.mxu0 0
      %2394 = vmatmul.mubr.bf16.gmra.mrb[0].mxu0 %v2083
      %v2395 = vpop.f32.mrb[0].mxu0
      %v2396 = vadd.f32 0.0, %v2395
      %v2397 = vpop.f32.mrb[0].mxu0
      %v2398 = vpop.f32.mrb[0].mxu0
      %v2399 = vadd.f32 0.0, %v2398
      %v2400 = vpop.f32.mrb[0].mxu0
      %2401 = vmatprep.mubr.bf16.mxu0 0
      %2402 = vmatmul.mubr.bf16.gmra.mrb[0].mxu0 %v2085
      %v2403 = vpop.f32.mrb[0].mxu0
      %v2404 = vadd.f32 0.0, %v2403
      %v2405 = vpop.f32.mrb[0].mxu0
      %v2406 = vpop.f32.mrb[0].mxu0
      %v2407 = vadd.f32 0.0, %v2406
      %v2408 = vpop.f32.mrb[0].mxu0
      %2409 = vmatprep.mubr.bf16.mxu0 0
      %2410 = vmatmul.mubr.bf16.gmra.mrb[0].mxu0 %v2087
      %v2411 = vpop.f32.mrb[0].mxu0
      %v2412 = vadd.f32 0.0, %v2411
      %v2413 = vpop.f32.mrb[0].mxu0
      %v2414 = vpop.f32.mrb[0].mxu0
      %v2415 = vadd.f32 0.0, %v2414
      %v2416 = vpop.f32.mrb[0].mxu0
      %2417 = vmatprep.mubr.bf16.mxu0 0
      %2418 = vmatmul.mubr.bf16.gmra.mrb[0].mxu0 %v2089
      %v2419 = vpop.f32.mrb[0].mxu0
      %v2420 = vadd.f32 0.0, %v2419
      %v2421 = vpop.f32.mrb[0].mxu0
      %v2422 = vpop.f32.mrb[0].mxu0
      %v2423 = vadd.f32 0.0, %v2422
      %v2424 = vpop.f32.mrb[0].mxu0
      %2425 = vmatprep.mubr.bf16.mxu0 0
      %2426 = vmatmul.mubr.bf16.gmra.mrb[0].mxu0 %v2091
      %v2427 = vpop.f32.mrb[0].mxu0
      %v2428 = vadd.f32 0.0, %v2427
      %v2429 = vpop.f32.mrb[0].mxu0
      %v2430 = vpop.f32.mrb[0].mxu0
      %v2431 = vadd.f32 0.0, %v2430
      %v2432 = vpop.f32.mrb[0].mxu0
      %2433 = vmatprep.mubr.bf16.mxu0 0
      %2434 = vmatmul.mubr.bf16.gmra.mrb[0].mxu0 %v2093
      %v2435 = vpop.f32.mrb[0].mxu0
      %v2436 = vadd.f32 0.0, %v2435
      %v2437 = vpop.f32.mrb[0].mxu0
      %v2438 = vpop.f32.mrb[0].mxu0
      %v2439 = vadd.f32 0.0, %v2438
      %v2440 = vpop.f32.mrb[0].mxu0
      %2441 = vmatprep.mubr.bf16.mxu0 0
      %2442 = vmatmul.mubr.bf16.gmra.mrb[0].mxu0 %v2095
      %v2443 = vpop.f32.mrb[0].mxu0
      %v2444 = vadd.f32 0.0, %v2443
      %v2445 = vpop.f32.mrb[0].mxu0
      %v2446 = vpop.f32.mrb[0].mxu0
      %v2447 = vadd.f32 0.0, %v2446
      %v2448 = vpop.f32.mrb[0].mxu0
      %2449 = vmatprep.mubr.bf16.mxu0 0
      %2450 = vmatmul.mubr.bf16.gmra.mrb[0].mxu0 %v2097
      %v2451 = vpop.f32.mrb[0].mxu0
      %v2452 = vadd.f32 0.0, %v2451
      %v2453 = vpop.f32.mrb[0].mxu0
      %v2454 = vpop.f32.mrb[0].mxu0
      %v2455 = vadd.f32 0.0, %v2454
      %v2456 = vpop.f32.mrb[0].mxu0
      %2457 = vmatprep.mubr.bf16.mxu0 0
      %2458 = vmatmul.mubr.bf16.gmra.mrb[0].mxu0 %v2300
      %v2459 = vpop.f32.mrb[0].mxu0
      %v2460 = vadd.f32 0.0, %v2459
      %v2461 = vpop.f32.mrb[0].mxu0
      %v2462 = vpop.f32.mrb[0].mxu0
      %v2463 = vadd.f32 0.0, %v2462
      %v2464 = vpop.f32.mrb[0].mxu0
      %2465 = vdwg.mxu0
      %v2466 = vadd.f32 %v2263, %v2340
      %v2467 = vadd.f32 %v2264, %v2343
      %v2468 = vadd.f32 %v2265, %v2348
      %v2469 = vadd.f32 %v2266, %v2351
      %v2470 = vadd.f32 %v2267, %v2356
      %v2471 = vadd.f32 %v2268, %v2359
      %v2472 = vadd.f32 %v2269, %v2364
      %v2473 = vadd.f32 %v2270, %v2367
      %v2474 = vadd.f32 %v2271, %v2372
      %v2475 = vadd.f32 %v2272, %v2375
      %v2476 = vadd.f32 %v2273, %v2380
      %v2477 = vadd.f32 %v2274, %v2383
      %v2478 = vadd.f32 %v2275, %v2388
      %v2479 = vadd.f32 %v2276, %v2391
      %v2480 = vadd.f32 %v2277, %v2396
      %v2481 = vadd.f32 %v2278, %v2399
      %v2482 = vadd.f32 %v2279, %v2404
      %v2483 = vadd.f32 %v2280, %v2407
      %v2484 = vadd.f32 %v2281, %v2412
      %v2485 = vadd.f32 %v2282, %v2415
      %v2486 = vadd.f32 %v2283, %v2420
      %v2487 = vadd.f32 %v2284, %v2423
      %v2488 = vadd.f32 %v2285, %v2428
      %v2489 = vadd.f32 %v2286, %v2431
      %v2490 = vadd.f32 %v2287, %v2436
      %v2491 = vadd.f32 %v2288, %v2439
      %v2492 = vadd.f32 %v2289, %v2444
      %v2493 = vadd.f32 %v2290, %v2447
      %v2494 = vadd.f32 %v2291, %v2452
      %v2495 = vadd.f32 %v2292, %v2455
      %v2496 = vadd.f32 %v2293, %v2460
      %v2497 = vadd.f32 %v2294, %v2463
      %v2500 = vunpack.c.l.b16 %v268
      %v2501 = vunpack.c.l.b16 %v269
      %v2502 = vpack.c.b16 %v2501, %v2500
      %v2504 = vsel %vm753, %v2502, 0
      %2506 = vmatprep.subr.bf16.mxu0 0
      %2507 = vmatpush1.bf16.msra.mxu0 %v2504
      %2508 = vmatprep.subr.bf16.mxu0 0
      %2509 = vmatpush1.bf16.msra.mxu0 0
      %2510 = vmatprep.subr.bf16.mxu0 0
      %2511 = vmatpush1.bf16.msra.mxu0 0
      %2512 = vmatprep.subr.bf16.mxu0 0
      %2513 = vmatpush1.bf16.msra.mxu0 0
      %2514 = vmatprep.subr.bf16.mxu0 0
      %2515 = vmatpush1.bf16.msra.mxu0 0
      %2516 = vmatprep.subr.bf16.mxu0 0
      %2517 = vmatpush1.bf16.msra.mxu0 0
      %2518 = vmatprep.subr.bf16.mxu0 0
      %2519 = vmatpush1.bf16.msra.mxu0 0
      %2520 = vmatprep.subr.bf16.mxu0 0
      %2521 = vmatpush1.bf16.msra.mxu0 0
      %2522 = vmatprep.subr.bf16.mxu0 0
      %2523 = vmatpush1.bf16.msra.mxu0 0
      %2524 = vmatprep.subr.bf16.mxu0 0
      %2525 = vmatpush1.bf16.msra.mxu0 0
      %2526 = vmatprep.subr.bf16.mxu0 0
      %2527 = vmatpush1.bf16.msra.mxu0 0
      %2528 = vmatprep.subr.bf16.mxu0 0
      %2529 = vmatpush1.bf16.msra.mxu0 0
      %2530 = vmatprep.subr.bf16.mxu0 0
      %2531 = vmatpush1.bf16.msra.mxu0 0
      %2532 = vmatprep.subr.bf16.mxu0 0
      %2533 = vmatpush1.bf16.msra.mxu0 0
      %2534 = vmatprep.subr.bf16.mxu0 0
      %2535 = vmatpush1.bf16.msra.mxu0 0
      %2536 = vmatprep.subr.bf16.mxu0 0
      %2537 = vmatpush1.bf16.msra.mxu0 0
      %2538 = vmatprep.mubr.bf16.mxu0 0
      %2539 = vmatmul.mubr.bf16.gmra.mrb[0].mxu0 %v2069
      %v2540 = vpop.f32.mrb[0].mxu0
      %v2541 = vadd.f32 0.0, %v2540
      %v2542 = vpop.f32.mrb[0].mxu0
      %v2543 = vpop.f32.mrb[0].mxu0
      %v2544 = vadd.f32 0.0, %v2543
      %v2545 = vpop.f32.mrb[0].mxu0
      %2546 = vmatprep.mubr.bf16.mxu0 0
      %2547 = vmatmul.mubr.bf16.gmra.mrb[0].mxu0 %v2073
      %v2548 = vpop.f32.mrb[0].mxu0
      %v2549 = vadd.f32 0.0, %v2548
      %v2550 = vpop.f32.mrb[0].mxu0
      %v2551 = vpop.f32.mrb[0].mxu0
      %v2552 = vadd.f32 0.0, %v2551
      %v2553 = vpop.f32.mrb[0].mxu0
      %2554 = vmatprep.mubr.bf16.mxu0 0
      %2555 = vmatmul.mubr.bf16.gmra.mrb[0].mxu0 %v2075
      %v2556 = vpop.f32.mrb[0].mxu0
      %v2557 = vadd.f32 0.0, %v2556
      %v2558 = vpop.f32.mrb[0].mxu0
      %v2559 = vpop.f32.mrb[0].mxu0
      %v2560 = vadd.f32 0.0, %v2559
      %v2561 = vpop.f32.mrb[0].mxu0
      %2562 = vmatprep.mubr.bf16.mxu0 0
      %2563 = vmatmul.mubr.bf16.gmra.mrb[0].mxu0 %v2077
      %v2564 = vpop.f32.mrb[0].mxu0
      %v2565 = vadd.f32 0.0, %v2564
      %v2566 = vpop.f32.mrb[0].mxu0
      %v2567 = vpop.f32.mrb[0].mxu0
      %v2568 = vadd.f32 0.0, %v2567
      %v2569 = vpop.f32.mrb[0].mxu0
      %2570 = vmatprep.mubr.bf16.mxu0 0
      %2571 = vmatmul.mubr.bf16.gmra.mrb[0].mxu0 %v2079
      %v2572 = vpop.f32.mrb[0].mxu0
      %v2573 = vadd.f32 0.0, %v2572
      %v2574 = vpop.f32.mrb[0].mxu0
      %v2575 = vpop.f32.mrb[0].mxu0
      %v2576 = vadd.f32 0.0, %v2575
      %v2577 = vpop.f32.mrb[0].mxu0
      %2578 = vmatprep.mubr.bf16.mxu0 0
      %2579 = vmatmul.mubr.bf16.gmra.mrb[0].mxu0 %v2081
      %v2580 = vpop.f32.mrb[0].mxu0
      %v2581 = vadd.f32 0.0, %v2580
      %v2582 = vpop.f32.mrb[0].mxu0
      %v2583 = vpop.f32.mrb[0].mxu0
      %v2584 = vadd.f32 0.0, %v2583
      %v2585 = vpop.f32.mrb[0].mxu0
      %2586 = vmatprep.mubr.bf16.mxu0 0
      %2587 = vmatmul.mubr.bf16.gmra.mrb[0].mxu0 %v2083
      %v2588 = vpop.f32.mrb[0].mxu0
      %v2589 = vadd.f32 0.0, %v2588
      %v2590 = vpop.f32.mrb[0].mxu0
      %v2591 = vpop.f32.mrb[0].mxu0
      %v2592 = vadd.f32 0.0, %v2591
      %v2593 = vpop.f32.mrb[0].mxu0
      %2594 = vmatprep.mubr.bf16.mxu0 0
      %2595 = vmatmul.mubr.bf16.gmra.mrb[0].mxu0 %v2085
      %v2596 = vpop.f32.mrb[0].mxu0
      %v2597 = vadd.f32 0.0, %v2596
      %v2598 = vpop.f32.mrb[0].mxu0
      %v2599 = vpop.f32.mrb[0].mxu0
      %v2600 = vadd.f32 0.0, %v2599
      %v2601 = vpop.f32.mrb[0].mxu0
      %2602 = vmatprep.mubr.bf16.mxu0 0
      %2603 = vmatmul.mubr.bf16.gmra.mrb[0].mxu0 %v2087
      %v2604 = vpop.f32.mrb[0].mxu0
      %v2605 = vadd.f32 0.0, %v2604
      %v2606 = vpop.f32.mrb[0].mxu0
      %v2607 = vpop.f32.mrb[0].mxu0
      %v2608 = vadd.f32 0.0, %v2607
      %v2609 = vpop.f32.mrb[0].mxu0
      %2610 = vmatprep.mubr.bf16.mxu0 0
      %2611 = vmatmul.mubr.bf16.gmra.mrb[0].mxu0 %v2089
      %v2612 = vpop.f32.mrb[0].mxu0
      %v2613 = vadd.f32 0.0, %v2612
      %v2614 = vpop.f32.mrb[0].mxu0
      %v2615 = vpop.f32.mrb[0].mxu0
      %v2616 = vadd.f32 0.0, %v2615
      %v2617 = vpop.f32.mrb[0].mxu0
      %2618 = vmatprep.mubr.bf16.mxu0 0
      %2619 = vmatmul.mubr.bf16.gmra.mrb[0].mxu0 %v2091
      %v2620 = vpop.f32.mrb[0].mxu0
      %v2621 = vadd.f32 0.0, %v2620
      %v2622 = vpop.f32.mrb[0].mxu0
      %v2623 = vpop.f32.mrb[0].mxu0
      %v2624 = vadd.f32 0.0, %v2623
      %v2625 = vpop.f32.mrb[0].mxu0
      %2626 = vmatprep.mubr.bf16.mxu0 0
      %2627 = vmatmul.mubr.bf16.gmra.mrb[0].mxu0 %v2093
      %v2628 = vpop.f32.mrb[0].mxu0
      %v2629 = vadd.f32 0.0, %v2628
      %v2630 = vpop.f32.mrb[0].mxu0
      %v2631 = vpop.f32.mrb[0].mxu0
      %v2632 = vadd.f32 0.0, %v2631
      %v2633 = vpop.f32.mrb[0].mxu0
      %2634 = vmatprep.mubr.bf16.mxu0 0
      %2635 = vmatmul.mubr.bf16.gmra.mrb[0].mxu0 %v2095
      %v2636 = vpop.f32.mrb[0].mxu0
      %v2637 = vadd.f32 0.0, %v2636
      %v2638 = vpop.f32.mrb[0].mxu0
      %v2639 = vpop.f32.mrb[0].mxu0
      %v2640 = vadd.f32 0.0, %v2639
      %v2641 = vpop.f32.mrb[0].mxu0
      %2642 = vmatprep.mubr.bf16.mxu0 0
      %2643 = vmatmul.mubr.bf16.gmra.mrb[0].mxu0 %v2097
      %v2644 = vpop.f32.mrb[0].mxu0
      %v2645 = vadd.f32 0.0, %v2644
      %v2646 = vpop.f32.mrb[0].mxu0
      %v2647 = vpop.f32.mrb[0].mxu0
      %v2648 = vadd.f32 0.0, %v2647
      %v2649 = vpop.f32.mrb[0].mxu0
      %2650 = vmatprep.mubr.bf16.mxu0 0
      %2651 = vmatmul.mubr.bf16.gmra.mrb[0].mxu0 %v2300
      %v2652 = vpop.f32.mrb[0].mxu0
      %v2653 = vadd.f32 0.0, %v2652
      %v2654 = vpop.f32.mrb[0].mxu0
      %v2655 = vpop.f32.mrb[0].mxu0
      %v2656 = vadd.f32 0.0, %v2655
      %v2657 = vpop.f32.mrb[0].mxu0
      %2658 = vmatprep.mubr.bf16.mxu0 0
      %2659 = vmatmul.mubr.bf16.gmra.mrb[0].mxu0 %v2097
      %v2660 = vpop.f32.mrb[0].mxu0
      %v2661 = vadd.f32 0.0, %v2660
      %v2662 = vpop.f32.mrb[0].mxu0
      %v2663 = vpop.f32.mrb[0].mxu0
      %v2664 = vadd.f32 0.0, %v2663
      %v2665 = vpop.f32.mrb[0].mxu0
      %2666 = vdwg.mxu0
      %v2667 = vadd.f32 %v2466, %v2541
      %v2668 = vadd.f32 %v2467, %v2544
      %v2669 = vadd.f32 %v2468, %v2549
      %v2670 = vadd.f32 %v2469, %v2552
      %v2671 = vadd.f32 %v2470, %v2557
      %v2672 = vadd.f32 %v2471, %v2560
      %v2673 = vadd.f32 %v2472, %v2565
      %v2674 = vadd.f32 %v2473, %v2568
      %v2675 = vadd.f32 %v2474, %v2573
      %v2676 = vadd.f32 %v2475, %v2576
      %v2677 = vadd.f32 %v2476, %v2581
      %v2678 = vadd.f32 %v2477, %v2584
      %v2679 = vadd.f32 %v2478, %v2589
      %v2680 = vadd.f32 %v2479, %v2592
      %v2681 = vadd.f32 %v2480, %v2597
      %v2682 = vadd.f32 %v2481, %v2600
      %v2683 = vadd.f32 %v2482, %v2605
      %v2684 = vadd.f32 %v2483, %v2608
      %v2685 = vadd.f32 %v2484, %v2613
      %v2686 = vadd.f32 %v2485, %v2616
      %v2687 = vadd.f32 %v2486, %v2621
      %v2688 = vadd.f32 %v2487, %v2624
      %v2689 = vadd.f32 %v2488, %v2629
      %v2690 = vadd.f32 %v2489, %v2632
      %v2691 = vadd.f32 %v2490, %v2637
      %v2692 = vadd.f32 %v2491, %v2640
      %v2693 = vadd.f32 %v2492, %v2645
      %v2694 = vadd.f32 %v2493, %v2648
      %v2695 = vadd.f32 %v2494, %v2653
      %v2696 = vadd.f32 %v2495, %v2656
      %v2697 = vadd.f32 %v2496, %v2661
      %v2698 = vadd.f32 %v2497, %v2664
      %v2699 = vsel %vm629, %v2667, 0.0
      %v2700 = vsel %vm629, %v2668, 0.0
      %v2701 = vadd.f32 %v2699, %v2700
      %v2702 = vsel %vm629, %v2669, 0.0
      %v2703 = vadd.f32 %v2701, %v2702
      %v2704 = vsel %vm629, %v2670, 0.0
      %v2705 = vadd.f32 %v2703, %v2704
      %v2706 = vsel %vm629, %v2671, 0.0
      %v2707 = vadd.f32 %v2705, %v2706
      %v2708 = vsel %vm629, %v2672, 0.0
      %v2709 = vadd.f32 %v2707, %v2708
      %v2710 = vsel %vm629, %v2673, 0.0
      %v2711 = vadd.f32 %v2709, %v2710
      %v2712 = vsel %vm629, %v2674, 0.0
      %v2713 = vadd.f32 %v2711, %v2712
      %v2714 = vsel %vm629, %v2675, 0.0
      %v2715 = vadd.f32 %v2713, %v2714
      %v2716 = vsel %vm629, %v2676, 0.0
      %v2717 = vadd.f32 %v2715, %v2716
      %v2718 = vsel %vm629, %v2677, 0.0
      %v2719 = vadd.f32 %v2717, %v2718
      %v2720 = vsel %vm629, %v2678, 0.0
      %v2721 = vadd.f32 %v2719, %v2720
      %v2722 = vsel %vm629, %v2679, 0.0
      %v2723 = vadd.f32 %v2721, %v2722
      %v2724 = vsel %vm629, %v2680, 0.0
      %v2725 = vadd.f32 %v2723, %v2724
      %v2726 = vsel %vm629, %v2681, 0.0
      %v2727 = vadd.f32 %v2725, %v2726
      %v2728 = vsel %vm629, %v2682, 0.0
      %v2729 = vadd.f32 %v2727, %v2728
      %v2730 = vsel %vm629, %v2683, 0.0
      %v2731 = vadd.f32 %v2729, %v2730
      %v2732 = vsel %vm629, %v2684, 0.0
      %v2733 = vadd.f32 %v2731, %v2732
      %v2734 = vsel %vm629, %v2685, 0.0
      %v2735 = vadd.f32 %v2733, %v2734
      %v2736 = vsel %vm629, %v2686, 0.0
      %v2737 = vadd.f32 %v2735, %v2736
      %v2738 = vsel %vm629, %v2687, 0.0
      %v2739 = vadd.f32 %v2737, %v2738
      %v2740 = vsel %vm629, %v2688, 0.0
      %v2741 = vadd.f32 %v2739, %v2740
      %v2742 = vsel %vm629, %v2689, 0.0
      %v2743 = vadd.f32 %v2741, %v2742
      %v2744 = vsel %vm629, %v2690, 0.0
      %v2745 = vadd.f32 %v2743, %v2744
      %v2746 = vsel %vm629, %v2691, 0.0
      %v2747 = vadd.f32 %v2745, %v2746
      %v2748 = vsel %vm629, %v2692, 0.0
      %v2749 = vadd.f32 %v2747, %v2748
      %v2750 = vsel %vm629, %v2693, 0.0
      %v2751 = vadd.f32 %v2749, %v2750
      %v2752 = vsel %vm629, %v2694, 0.0
      %v2753 = vadd.f32 %v2751, %v2752
      %v2754 = vsel %vm629, %v2695, 0.0
      %v2755 = vadd.f32 %v2753, %v2754
      %v2756 = vsel %vm629, %v2696, 0.0
      %v2757 = vadd.f32 %v2755, %v2756
      %v2758 = vsel %vm629, %v2697, 0.0
      %v2759 = vadd.f32 %v2757, %v2758
      %v2760 = vsel %vm629, %v2698, 0.0
      %v2761 = vadd.f32 %v2759, %v2760
      %v2762 = vrot.slane %v2761, 4
      %v2763 = vadd.f32 %v2761, %v2762
      %v2764 = vrot.slane %v2763, 2
      %v2765 = vadd.f32 %v2763, %v2764
      %v2766 = vrot.slane %v2765, 1
      %v2767 = vadd.f32 %v2765, %v2766
      %v2768 = vmul.f32 %v2767, %v1423
      %v2769 = vsub.f32 %v2667, %v2768
      %v2770 = vsub.f32 %v2668, %v2768
      %v2771 = vsub.f32 %v2669, %v2768
      %v2772 = vsub.f32 %v2670, %v2768
      %v2773 = vsub.f32 %v2671, %v2768
      %v2774 = vsub.f32 %v2672, %v2768
      %v2775 = vsub.f32 %v2673, %v2768
      %v2776 = vsub.f32 %v2674, %v2768
      %v2777 = vsub.f32 %v2675, %v2768
      %v2778 = vsub.f32 %v2676, %v2768
      %v2779 = vsub.f32 %v2677, %v2768
      %v2780 = vsub.f32 %v2678, %v2768
      %v2781 = vsub.f32 %v2679, %v2768
      %v2782 = vsub.f32 %v2680, %v2768
      %v2783 = vsub.f32 %v2681, %v2768
      %v2784 = vsub.f32 %v2682, %v2768
      %v2785 = vsub.f32 %v2683, %v2768
      %v2786 = vsub.f32 %v2684, %v2768
      %v2787 = vsub.f32 %v2685, %v2768
      %v2788 = vsub.f32 %v2686, %v2768
      %v2789 = vsub.f32 %v2687, %v2768
      %v2790 = vsub.f32 %v2688, %v2768
      %v2791 = vsub.f32 %v2689, %v2768
      %v2792 = vsub.f32 %v2690, %v2768
      %v2793 = vsub.f32 %v2691, %v2768
      %v2794 = vsub.f32 %v2692, %v2768
      %v2795 = vsub.f32 %v2693, %v2768
      %v2796 = vsub.f32 %v2694, %v2768
      %v2797 = vsub.f32 %v2695, %v2768
      %v2798 = vsub.f32 %v2696, %v2768
      %v2799 = vsub.f32 %v2697, %v2768
      %v2800 = vsub.f32 %v2698, %v2768
      %v2801 = vmul.f32 %v2769, %v2769
      %v2802 = vmul.f32 %v2770, %v2770
      %v2803 = vmul.f32 %v2771, %v2771
      %v2804 = vmul.f32 %v2772, %v2772
      %v2805 = vmul.f32 %v2773, %v2773
      %v2806 = vmul.f32 %v2774, %v2774
      %v2807 = vmul.f32 %v2775, %v2775
      %v2808 = vmul.f32 %v2776, %v2776
      %v2809 = vmul.f32 %v2777, %v2777
      %v2810 = vmul.f32 %v2778, %v2778
      %v2811 = vmul.f32 %v2779, %v2779
      %v2812 = vmul.f32 %v2780, %v2780
      %v2813 = vmul.f32 %v2781, %v2781
      %v2814 = vmul.f32 %v2782, %v2782
      %v2815 = vmul.f32 %v2783, %v2783
      %v2816 = vmul.f32 %v2784, %v2784
      %v2817 = vmul.f32 %v2785, %v2785
      %v2818 = vmul.f32 %v2786, %v2786
      %v2819 = vmul.f32 %v2787, %v2787
      %v2820 = vmul.f32 %v2788, %v2788
      %v2821 = vmul.f32 %v2789, %v2789
      %v2822 = vmul.f32 %v2790, %v2790
      %v2823 = vmul.f32 %v2791, %v2791
      %v2824 = vmul.f32 %v2792, %v2792
      %v2825 = vmul.f32 %v2793, %v2793
      %v2826 = vmul.f32 %v2794, %v2794
      %v2827 = vmul.f32 %v2795, %v2795
      %v2828 = vmul.f32 %v2796, %v2796
      %v2829 = vmul.f32 %v2797, %v2797
      %v2830 = vmul.f32 %v2798, %v2798
      %v2831 = vmul.f32 %v2799, %v2799
      %v2832 = vmul.f32 %v2800, %v2800
      %v2833 = vsel %vm629, %v2801, 0.0
      %v2834 = vsel %vm629, %v2802, 0.0
      %v2835 = vadd.f32 %v2833, %v2834
      %v2836 = vsel %vm629, %v2803, 0.0
      %v2837 = vadd.f32 %v2835, %v2836
      %v2838 = vsel %vm629, %v2804, 0.0
      %v2839 = vadd.f32 %v2837, %v2838
      %v2840 = vsel %vm629, %v2805, 0.0
      %v2841 = vadd.f32 %v2839, %v2840
      %v2842 = vsel %vm629, %v2806, 0.0
      %v2843 = vadd.f32 %v2841, %v2842
      %v2844 = vsel %vm629, %v2807, 0.0
      %v2845 = vadd.f32 %v2843, %v2844
      %v2846 = vsel %vm629, %v2808, 0.0
      %v2847 = vadd.f32 %v2845, %v2846
      %v2848 = vsel %vm629, %v2809, 0.0
      %v2849 = vadd.f32 %v2847, %v2848
      %v2850 = vsel %vm629, %v2810, 0.0
      %v2851 = vadd.f32 %v2849, %v2850
      %v2852 = vsel %vm629, %v2811, 0.0
      %v2853 = vadd.f32 %v2851, %v2852
      %v2854 = vsel %vm629, %v2812, 0.0
      %v2855 = vadd.f32 %v2853, %v2854
      %v2856 = vsel %vm629, %v2813, 0.0
      %v2857 = vadd.f32 %v2855, %v2856
      %v2858 = vsel %vm629, %v2814, 0.0
      %v2859 = vadd.f32 %v2857, %v2858
      %v2860 = vsel %vm629, %v2815, 0.0
      %v2861 = vadd.f32 %v2859, %v2860
      %v2862 = vsel %vm629, %v2816, 0.0
      %v2863 = vadd.f32 %v2861, %v2862
      %v2864 = vsel %vm629, %v2817, 0.0
      %v2865 = vadd.f32 %v2863, %v2864
      %v2866 = vsel %vm629, %v2818, 0.0
      %v2867 = vadd.f32 %v2865, %v2866
      %v2868 = vsel %vm629, %v2819, 0.0
      %v2869 = vadd.f32 %v2867, %v2868
      %v2870 = vsel %vm629, %v2820, 0.0
      %v2871 = vadd.f32 %v2869, %v2870
      %v2872 = vsel %vm629, %v2821, 0.0
      %v2873 = vadd.f32 %v2871, %v2872
      %v2874 = vsel %vm629, %v2822, 0.0
      %v2875 = vadd.f32 %v2873, %v2874
      %v2876 = vsel %vm629, %v2823, 0.0
      %v2877 = vadd.f32 %v2875, %v2876
      %v2878 = vsel %vm629, %v2824, 0.0
      %v2879 = vadd.f32 %v2877, %v2878
      %v2880 = vsel %vm629, %v2825, 0.0
      %v2881 = vadd.f32 %v2879, %v2880
      %v2882 = vsel %vm629, %v2826, 0.0
      %v2883 = vadd.f32 %v2881, %v2882
      %v2884 = vsel %vm629, %v2827, 0.0
      %v2885 = vadd.f32 %v2883, %v2884
      %v2886 = vsel %vm629, %v2828, 0.0
      %v2887 = vadd.f32 %v2885, %v2886
      %v2888 = vsel %vm629, %v2829, 0.0
      %v2889 = vadd.f32 %v2887, %v2888
      %v2890 = vsel %vm629, %v2830, 0.0
      %v2891 = vadd.f32 %v2889, %v2890
      %v2892 = vsel %vm629, %v2831, 0.0
      %v2893 = vadd.f32 %v2891, %v2892
      %v2894 = vsel %vm629, %v2832, 0.0
      %v2895 = vadd.f32 %v2893, %v2894
      %v2896 = vrot.slane %v2895, 4
      %v2897 = vadd.f32 %v2895, %v2896
      %v2898 = vrot.slane %v2897, 2
      %v2899 = vadd.f32 %v2897, %v2898
      %v2900 = vrot.slane %v2899, 1
      %v2901 = vadd.f32 %v2899, %v2900
      %v2902 = vmul.f32 %v2901, %v1423
      %v2903 = vadd.f32 %v2902, 1e-05
      %v2904 = vrsqrt.pop %v2903
      %v2905 = vmul.f32 %v2769, %v2904
      %v2906 = vmul.f32 %v2770, %v2904
      %v2907 = vmul.f32 %v2771, %v2904
      %v2908 = vmul.f32 %v2772, %v2904
      %v2909 = vmul.f32 %v2773, %v2904
      %v2910 = vmul.f32 %v2774, %v2904
      %v2911 = vmul.f32 %v2775, %v2904
      %v2912 = vmul.f32 %v2776, %v2904
      %v2913 = vmul.f32 %v2777, %v2904
      %v2914 = vmul.f32 %v2778, %v2904
      %v2915 = vmul.f32 %v2779, %v2904
      %v2916 = vmul.f32 %v2780, %v2904
      %v2917 = vmul.f32 %v2781, %v2904
      %v2918 = vmul.f32 %v2782, %v2904
      %v2919 = vmul.f32 %v2783, %v2904
      %v2920 = vmul.f32 %v2784, %v2904
      %v2921 = vmul.f32 %v2785, %v2904
      %v2922 = vmul.f32 %v2786, %v2904
      %v2923 = vmul.f32 %v2787, %v2904
      %v2924 = vmul.f32 %v2788, %v2904
      %v2925 = vmul.f32 %v2789, %v2904
      %v2926 = vmul.f32 %v2790, %v2904
      %v2927 = vmul.f32 %v2791, %v2904
      %v2928 = vmul.f32 %v2792, %v2904
      %v2929 = vmul.f32 %v2793, %v2904
      %v2930 = vmul.f32 %v2794, %v2904
      %v2931 = vmul.f32 %v2795, %v2904
      %v2932 = vmul.f32 %v2796, %v2904
      %v2933 = vmul.f32 %v2797, %v2904
      %v2934 = vmul.f32 %v2798, %v2904
      %v2935 = vmul.f32 %v2799, %v2904
      %v2936 = vmul.f32 %v2800, %v2904
      %v2937 = vadd.f32 %v226, %v2905
      %v2938 = vadd.f32 %v227, %v2906
      %v2939 = vadd.f32 %v228, %v2907
      %v2940 = vadd.f32 %v229, %v2908
      %v2941 = vadd.f32 %v230, %v2909
      %v2942 = vadd.f32 %v231, %v2910
      %v2943 = vadd.f32 %v232, %v2911
      %v2944 = vadd.f32 %v233, %v2912
      %v2945 = vadd.f32 %v234, %v2913
      %v2946 = vadd.f32 %v235, %v2914
      %v2947 = vadd.f32 %v236, %v2915
      %v2948 = vadd.f32 %v237, %v2916
      %v2949 = vadd.f32 %v238, %v2917
      %v2950 = vadd.f32 %v239, %v2918
      %v2951 = vadd.f32 %v240, %v2919
      %v2952 = vadd.f32 %v241, %v2920
      %v2953 = vadd.f32 %v242, %v2921
      %v2954 = vadd.f32 %v243, %v2922
      %v2955 = vadd.f32 %v244, %v2923
      %v2956 = vadd.f32 %v245, %v2924
      %v2957 = vadd.f32 %v246, %v2925
      %v2958 = vadd.f32 %v247, %v2926
      %v2959 = vadd.f32 %v248, %v2927
      %v2960 = vadd.f32 %v249, %v2928
      %v2961 = vadd.f32 %v250, %v2929
      %v2962 = vadd.f32 %v251, %v2930
      %v2963 = vadd.f32 %v252, %v2931
      %v2964 = vadd.f32 %v253, %v2932
      %v2965 = vadd.f32 %v254, %v2933
      %v2966 = vadd.f32 %v255, %v2934
      %v2967 = vadd.f32 %v256, %v2935
      %v2968 = vadd.f32 %v257, %v2936
      %2969 = vst.msk [vmem:[%s224] sm:$0xff] %vm629, %v2937
      %2970 = vst.msk [vmem:[%s224 + $0x8] sm:$0xff] %vm629, %v2938
      %2971 = vst.msk [vmem:[%s224 + $0x10] sm:$0xff] %vm629, %v2939
      %2972 = vst.msk [vmem:[%s224 + $0x18] sm:$0xff] %vm629, %v2940
      %2973 = vst.msk [vmem:[%s224 + $0x20] sm:$0xff] %vm629, %v2941
      %2974 = vst.msk [vmem:[%s224 + $0x28] sm:$0xff] %vm629, %v2942
      %2975 = vst.msk [vmem:[%s224 + $0x30] sm:$0xff] %vm629, %v2943
      %2976 = vst.msk [vmem:[%s224 + $0x38] sm:$0xff] %vm629, %v2944
      %2977 = vst.msk [vmem:[%s224 + $0x40] sm:$0xff] %vm629, %v2945
      %2978 = vst.msk [vmem:[%s224 + $0x48] sm:$0xff] %vm629, %v2946
      %2979 = vst.msk [vmem:[%s224 + $0x50] sm:$0xff] %vm629, %v2947
      %2980 = vst.msk [vmem:[%s224 + $0x58] sm:$0xff] %vm629, %v2948
      %2981 = vst.msk [vmem:[%s224 + $0x60] sm:$0xff] %vm629, %v2949
      %2982 = vst.msk [vmem:[%s224 + $0x68] sm:$0xff] %vm629, %v2950
      %2983 = vst.msk [vmem:[%s224 + $0x70] sm:$0xff] %vm629, %v2951
      %2984 = vst.msk [vmem:[%s224 + $0x78] sm:$0xff] %vm629, %v2952
      %2985 = vst.msk [vmem:[%s224 + $0x80] sm:$0xff] %vm629, %v2953
      %2986 = vst.msk [vmem:[%s224 + $0x88] sm:$0xff] %vm629, %v2954
      %2987 = vst.msk [vmem:[%s224 + $0x90] sm:$0xff] %vm629, %v2955
      %2988 = vst.msk [vmem:[%s224 + $0x98] sm:$0xff] %vm629, %v2956
      %2989 = vst.msk [vmem:[%s224 + $0xa0] sm:$0xff] %vm629, %v2957
      %2990 = vst.msk [vmem:[%s224 + $0xa8] sm:$0xff] %vm629, %v2958
      %2991 = vst.msk [vmem:[%s224 + $0xb0] sm:$0xff] %vm629, %v2959
      %2992 = vst.msk [vmem:[%s224 + $0xb8] sm:$0xff] %vm629, %v2960
      %2993 = vst.msk [vmem:[%s224 + $0xc0] sm:$0xff] %vm629, %v2961
      %2994 = vst.msk [vmem:[%s224 + $0xc8] sm:$0xff] %vm629, %v2962
      %2995 = vst.msk [vmem:[%s224 + $0xd0] sm:$0xff] %vm629, %v2963
      %2996 = vst.msk [vmem:[%s224 + $0xd8] sm:$0xff] %vm629, %v2964
      %2997 = vst.msk [vmem:[%s224 + $0xe0] sm:$0xff] %vm629, %v2965
      %2998 = vst.msk [vmem:[%s224 + $0xe8] sm:$0xff] %vm629, %v2966
      %2999 = vst.msk [vmem:[%s224 + $0xf0] sm:$0xff] %vm629, %v2967
      %3000 = vst.msk [vmem:[%s224 + $0xf8] sm:$0xff] %vm629, %v2968
      %p3001 = scmp.lt.s32.totalorder %s16, 1
      %s3002 = scalar_select %p3001, %s16, 1
      %s3003 = smul.addr %s3002, 32
      %s3004 = smul.addr %s3003, 8
      %s3005 = scalar_lea.vmem %s5, %s3004
      // Predicated region
      $region41: #{residual_block.1} parent=39 // pred_check
        %p3006 = pneg %p144
      $region42: #{residual_block.1} parent=39 // pred_check_branch
        %3008 = sbr.rel (%p3006) target = $region44
      $region43: #{residual_block.1} parent=39 // pred_region
        _
      $region44: #{residual_block.1} parent=39 // pred_fallthru
        _
    $region40: #{residual_block.1} parent=5 // pred_fallthru
      _
    %p3009 = scmp.le.s32.totalorder 2, %s11
    // Predicated region
    $region45: #{residual_block.1} parent=5 // pred_check
      %p3010 = pneg %p3009
    $region46: #{residual_block.1} parent=5 // pred_check_branch
      %3012 = sbr.rel (%p3010) target = $region48
    $region47: #{residual_block.1} parent=5 // pred_region
      %s3013 = ssub.s32 %s11, 2
      // Predicated region
      $region49: #{residual_block.1} parent=47 // pred_check
        %p3014 = pneg %p150
      $region50: #{residual_block.1} parent=47 // pred_check_branch
        %3016 = sbr.rel (%p3014) target = $region52
      $region51: #{residual_block.1} parent=47 // pred_region
        %p3017 = scmp.lt.s32.totalorder %s17, 1
        %s3018 = scalar_select %p3017, %s17, 1
        %s3019 = smul.addr %s3018, 32
        %s3020 = smul.addr %s3019, 8
        %s3021 = scalar_lea.vmem %s5, %s3020
      $region52: #{residual_block.1} parent=47 // pred_fallthru
        _
    $region48: #{residual_block.1} parent=5 // pred_fallthru
      _
  $region6: #{residual_block.1} parent=0 // loop_footer
    %s15 = sadd.s32 1, %s11
  $region7: #{residual_block.1} parent=0 // loop_footer_branch
    %10 = sbr.rel target = $region3
  $region8: #{residual_block.1} parent=0 // loop_exit
    _

</llo_original>
